<compile_context>
chip_gen: v7x
topology: tpu7x:2x2x1
jax: 0.10.0
libtpu: 0.0.40
codegen_flags: <defaults>
</compile_context>

<pallas_src>
import functools

import jax
import jax.numpy as jnp
from jax import lax
from jax.experimental import pallas as pl
from jax.experimental.pallas import tpu as pltpu

BN_EPS = 1e-5

# MXU operand dtype.  Set to jnp.bfloat16 on v6e / v7x for ~2x MXU throughput and
# half the VMEM/HBM bytes for the activation stream (accumulation stays f32).
# Kept f32 here so the strict 1e-4 parity check against the f32 reference holds.
MXU_DTYPE = jnp.float32

_VMEM_LIMIT = 32 * 1024 * 1024  # safe on v5e/v6e (128 MiB) and v7x (64 MiB physical)


def _row_tile(total_rows, row_bytes, budget=4 * 1024 * 1024):
    """Largest row tile that divides total_rows and fits `budget` bytes.

    Prefers multiples of 8 (always a legal second-minor block dim); falls back to
    the full extent, which is always layout-legal (equals the array dim)."""
    cap = max(1, budget // max(int(row_bytes), 1))
    if total_rows <= cap:
        return total_rows
    for d in range(min(cap, total_rows), 0, -1):
        if total_rows % d == 0 and d % 8 == 0:
            return d
    return total_rows


# ----------------------------- Pallas kernels ------------------------------ #

def _maxpool_kernel(x_ref, o_ref, *, C):
    # x_ref: (TR, 2, Wo, 2*C)  -- rows of 2x2 pooling windows (one DMA per tile)
    # o_ref: (TR, Wo, C)
    v = x_ref[...]
    m = jnp.maximum(v[:, 0], v[:, 1])            # max over the two input rows
    o_ref[...] = jnp.maximum(m[:, :, :C], m[:, :, C:])   # max over the two columns


def _conv_rows_kernel(xp_ref, w_ref, y_ref, stats_ref, *, Ho, Wo, C, Cout):
    # xp_ref:    (Ho+2, Wo+2, C)   zero-padded NHWC activation of ONE image
    # w_ref:     (9*C, Cout)       conv weight, rows ordered (dy, dx, ci)
    # y_ref:     (Ho, Wo, Cout)    pre-BN conv output
    # stats_ref: (2, Cout)         per-image [sum, sum_of_squares] over H*W
    w = w_ref[...].astype(MXU_DTYPE)             # hoisted out of the row loop

    def row_body(y, carry):
        ssum, ssq = carry
        rows3 = [xp_ref[y + dy] for dy in range(3)]          # 3 x (Wo+2, C)
        taps = [rows3[dy][dx:dx + Wo, :] for dy in range(3) for dx in range(3)]
        patches = jnp.concatenate(taps, axis=1).astype(MXU_DTYPE)   # (Wo, 9C)
        acc = jnp.dot(patches, w, preferred_element_type=jnp.float32)  # (Wo, Cout)
        y_ref[y] = acc
        ssum = ssum + jnp.sum(acc, axis=0, keepdims=True)
        ssq = ssq + jnp.sum(acc * acc, axis=0, keepdims=True)
        return ssum, ssq

    zeros = jnp.zeros((1, Cout), jnp.float32)
    ssum, ssq = lax.fori_loop(0, Ho, row_body, (zeros, zeros))
    stats_ref[pl.ds(0, 1), :] = ssum
    stats_ref[pl.ds(1, 1), :] = ssq


def _bn_relu_kernel(y_ref, scale_ref, shift_ref, o_ref):
    # Folded BatchNorm (single FMA) + ReLU on a lane-dense (rows, W*Cout) view.
    o_ref[...] = jnp.maximum(y_ref[...] * scale_ref[...] + shift_ref[...], 0.0)


# ------------------------------ JAX wrappers -------------------------------- #

def maxpool2x2(x_nhwc):
    N, H, W, C = x_nhwc.shape
    Ho, Wo = H // 2, W // 2
    rows = N * Ho
    xr = x_nhwc.reshape(rows, 2, Wo, 2 * C)      # contiguous (free) reshape
    tr = _row_tile(rows, 2 * Wo * 2 * C * 4)
    out = pl.pallas_call(
        functools.partial(_maxpool_kernel, C=C),
        out_shape=jax.ShapeDtypeStruct((rows, Wo, C), jnp.float32),
        grid=(rows // tr,),
        in_specs=[pl.BlockSpec((tr, 2, Wo, 2 * C), lambda i: (i, 0, 0, 0))],
        out_specs=pl.BlockSpec((tr, Wo, C), lambda i: (i, 0, 0)),
        compiler_params=pltpu.CompilerParams(
            dimension_semantics=("parallel",),
            vmem_limit_bytes=_VMEM_LIMIT),
    )(xr)
    return out.reshape(N, Ho, Wo, C)


def conv3x3_bn_relu(x_nhwc, weight_oihw, gamma, beta):
    """3x3 conv (stride 1, pad 1, no bias) + BatchNorm(batch stats) + ReLU."""
    N, H, W, Cin = x_nhwc.shape
    Cout = weight_oihw.shape[0]
    Hp, Wp = H + 2, W + 2

    # Only the +2 halo rows/cols are materialized (not a 9x im2col copy).
    xp = jnp.pad(x_nhwc, ((0, 0), (1, 1), (1, 1), (0, 0)))
    # (Cout, Cin, kh, kw) -> (kh, kw, Cin, Cout) -> (9*Cin, Cout); row order (dy, dx, ci).
    wt = jnp.transpose(weight_oihw, (2, 3, 1, 0)).reshape(9 * Cin, Cout)

    # Pass 1: conv GEMM + per-image BN partial statistics.
    y_pre, stats = pl.pallas_call(
        functools.partial(_conv_rows_kernel, Ho=H, Wo=W, C=Cin, Cout=Cout),
        out_shape=(jax.ShapeDtypeStruct((N, H, W, Cout), jnp.float32),
                   jax.ShapeDtypeStruct((N, 2, Cout), jnp.float32)),
        grid=(N,),
        in_specs=[pl.BlockSpec((None, Hp, Wp, Cin), lambda n: (n, 0, 0, 0)),
                  pl.BlockSpec((9 * Cin, Cout), lambda n: (0, 0))],
        out_specs=(pl.BlockSpec((None, H, W, Cout), lambda n: (n, 0, 0, 0)),
                   pl.BlockSpec((None, 2, Cout), lambda n: (n, 0, 0))),
        compiler_params=pltpu.CompilerParams(
            dimension_semantics=("parallel",),
            vmem_limit_bytes=_VMEM_LIMIT),
    )(xp, wt)

    # Global batch statistics (training-mode BN), folded into one scale/shift FMA.
    count = float(N * H * W)
    total = jnp.sum(stats, axis=0)               # (2, Cout)
    mean = total[0] / count
    var = total[1] / count - mean * mean         # f32 accumulation keeps this within tolerance
    inv = lax.rsqrt(var + BN_EPS)
    scale = gamma * inv
    shift = beta - mean * scale

    # Pass 2: normalize + ReLU on a lane-dense (rows, W*Cout) view.
    rows = N * H
    y2 = y_pre.reshape(rows, W * Cout)           # contiguous (free) reshape
    scale_row = jnp.tile(scale, W).reshape(1, W * Cout)
    shift_row = jnp.tile(shift, W).reshape(1, W * Cout)
    tr = _row_tile(rows, W * Cout * 4)
    out = pl.pallas_call(
        _bn_relu_kernel,
        out_shape=jax.ShapeDtypeStruct((rows, W * Cout), jnp.float32),
        grid=(rows // tr,),
        in_specs=[pl.BlockSpec((tr, W * Cout), lambda i: (i, 0)),
                  pl.BlockSpec((1, W * Cout), lambda i: (0, 0)),
                  pl.BlockSpec((1, W * Cout), lambda i: (0, 0))],
        out_specs=pl.BlockSpec((tr, W * Cout), lambda i: (i, 0)),
        compiler_params=pltpu.CompilerParams(
            dimension_semantics=("parallel",),
            vmem_limit_bytes=_VMEM_LIMIT),
    )(y2, scale_row, shift_row)
    return out.reshape(N, H, W, Cout)


def down_forward(x_nchw, params):
    """Down.forward: maxpool(2) -> ConvBNReLU -> ConvBNReLU.  NCHW in/out."""
    x = jnp.transpose(x_nchw, (0, 2, 3, 1))          # NCHW -> NHWC
    x = maxpool2x2(x)
    x = conv3x3_bn_relu(x, params["w1"], params["g1"], params["b1"])
    x = conv3x3_bn_relu(x, params["w2"], params["g2"], params["b2"])
    return jnp.transpose(x, (0, 3, 1, 2))            # NHWC -> NCHW


# ------------------------------- Reference ---------------------------------- #

def _reference(x_nchw, params):
    """Pure-JAX reference (lax conv / reduce_window) for the correctness check."""
    x = lax.reduce_window(x_nchw, -jnp.inf, lax.max,
                          (1, 1, 2, 2), (1, 1, 2, 2), "VALID")

    def cbr(x, w, g, b):
        y = lax.conv_general_dilated(x, w, (1, 1), ((1, 1), (1, 1)),
                                     dimension_numbers=("NCHW", "OIHW", "NCHW"))
        mean = jnp.mean(y, axis=(0, 2, 3), keepdims=True)
        var = jnp.mean((y - mean) ** 2, axis=(0, 2, 3), keepdims=True)
        y = (y - mean) * lax.rsqrt(var + BN_EPS)
        y = y * g.reshape(1, -1, 1, 1) + b.reshape(1, -1, 1, 1)
        return jnp.maximum(y, 0.0)

    x = cbr(x, params["w1"], params["g1"], params["b1"])
    x = cbr(x, params["w2"], params["g2"], params["b2"])
    return x


# --------------------------------- Main -------------------------------------- #

if __name__ == "__main__":
    in_channels, out_channels = 4, 8
    N, H, W = 2, 16, 16

    key = jax.random.PRNGKey(0)
    kx, kw1, kw2 = jax.random.split(key, 3)

    x = jax.random.normal(kx, (N, in_channels, H, W), dtype=jnp.float32)

    # Deterministic parameter init (Conv2d: scaled normal; BN: gamma=1, beta=0).
    params = {
        "w1": 0.1 * jax.random.normal(kw1, (out_channels, in_channels, 3, 3), jnp.float32),
        "g1": jnp.ones((out_channels,), jnp.float32),
        "b1": jnp.zeros((out_channels,), jnp.float32),
        "w2": 0.1 * jax.random.normal(kw2, (out_channels, out_channels, 3, 3), jnp.float32),
        "g2": jnp.ones((out_channels,), jnp.float32),
        "b2": jnp.zeros((out_channels,), jnp.float32),
    }

    down_fn = jax.jit(down_forward)
    y = jax.block_until_ready(down_fn(x, params))
    assert y.shape == (N, out_channels, H // 2, W // 2), y.shape

    y_ref = jax.block_until_ready(_reference(x, params))
    assert jnp.allclose(y, y_ref, atol=1e-4, rtol=1e-4), float(jnp.max(jnp.abs(y - y_ref)))

    print("KERNEL_OK")
</pallas_src>

<mosaic_0001>
module attributes {stable_mosaic.version = 11 : i64} {
  func.func @_maxpool_kernel(%arg0: i32, %arg1: memref<16x2x8x8xf32, #tpu.memory_space<vmem>>, %arg2: memref<16x8x4xf32, #tpu.memory_space<vmem>>) attributes {dimension_semantics = [#tpu.dimension_semantics<parallel>], iteration_bounds = array<i64: 1>, scalar_prefetch = 0 : i64, scratch_operands = 0 : i64, tpu.core_type = #tpu.core_type<tc>, window_params = [{transform_indices = @transform_0, window_bounds = array<i64: 16, 2, 8, 8>}, {transform_indices = @transform_1, window_bounds = array<i64: 16, 8, 4>}]} {
    %c0 = arith.constant 0 : index
    %c0_0 = arith.constant 0 : index
    %c0_1 = arith.constant 0 : index
    %c0_2 = arith.constant 0 : index
    %0 = vector.load %arg1[%c0, %c0_0, %c0_1, %c0_2] : memref<16x2x8x8xf32, #tpu.memory_space<vmem>>, vector<16x2x8x8xf32>
    %1 = vector.extract_strided_slice %0 {offsets = [0, 0, 0, 0], sizes = [16, 1, 8, 8], strides = [1, 1, 1, 1]} : vector<16x2x8x8xf32> to vector<16x1x8x8xf32>
    %2 = vector.shape_cast %1 : vector<16x1x8x8xf32> to vector<16x8x8xf32>
    %3 = vector.extract_strided_slice %0 {offsets = [0, 1, 0, 0], sizes = [16, 1, 8, 8], strides = [1, 1, 1, 1]} : vector<16x2x8x8xf32> to vector<16x1x8x8xf32>
    %4 = vector.shape_cast %3 : vector<16x1x8x8xf32> to vector<16x8x8xf32>
    %5 = arith.maximumf %2, %4 : vector<16x8x8xf32>
    %6 = vector.extract_strided_slice %5 {offsets = [0, 0, 0], sizes = [16, 8, 4], strides = [1, 1, 1]} : vector<16x8x8xf32> to vector<16x8x4xf32>
    %7 = vector.extract_strided_slice %5 {offsets = [0, 0, 4], sizes = [16, 8, 4], strides = [1, 1, 1]} : vector<16x8x8xf32> to vector<16x8x4xf32>
    %8 = arith.maximumf %6, %7 : vector<16x8x4xf32>
    %c0_3 = arith.constant 0 : index
    %c0_4 = arith.constant 0 : index
    %c0_5 = arith.constant 0 : index
    %9 = vector.load %arg2[%c0_3, %c0_4, %c0_5] : memref<16x8x4xf32, #tpu.memory_space<vmem>>, vector<16x8x4xf32>
    tpu.vector_store %arg2[%c0_3, %c0_4, %c0_5], %8 {strides = array<i32>} : memref<16x8x4xf32, #tpu.memory_space<vmem>>, vector<16x8x4xf32>,
    return
  }
  func.func @transform_0(%arg0: i32) -> (i32, i32, i32, i32) {
    %c0_i32 = arith.constant 0 : i32
    %c0_i32_0 = arith.constant 0 : i32
    %c0_i32_1 = arith.constant 0 : i32
    %c0_i32_2 = arith.constant 0 : i32
    return %arg0, %c0_i32, %c0_i32_0, %c0_i32_1 : i32, i32, i32, i32
  }
  func.func @transform_1(%arg0: i32) -> (i32, i32, i32) {
    %c0_i32 = arith.constant 0 : i32
    %c0_i32_0 = arith.constant 0 : i32
    %c0_i32_1 = arith.constant 0 : i32
    return %arg0, %c0_i32, %c0_i32_0 : i32, i32, i32
  }
}

module attributes {stable_mosaic.version = 11 : i64} {
  func.func @_conv_rows_kernel(%arg0: i32, %arg1: memref<1x10x10x4xf32, #tpu.memory_space<vmem>>, %arg2: memref<36x8xf32, #tpu.memory_space<vmem>>, %arg3: memref<1x8x8x8xf32, #tpu.memory_space<vmem>>, %arg4: memref<1x2x8xf32, #tpu.memory_space<vmem>>) attributes {dimension_semantics = [#tpu.dimension_semantics<parallel>], iteration_bounds = array<i64: 2>, scalar_prefetch = 0 : i64, scratch_operands = 0 : i64, tpu.core_type = #tpu.core_type<tc>, window_params = [{transform_indices = @transform_0, window_bounds = array<i64: 1, 10, 10, 4>}, {pipeline_mode = #tpu.pipeline_mode<synchronous>, transform_indices = @transform_1, window_bounds = array<i64: 36, 8>}, {transform_indices = @transform_2, window_bounds = array<i64: 1, 8, 8, 8>}, {transform_indices = @transform_3, window_bounds = array<i64: 1, 2, 8>}]} {
    %c0 = arith.constant 0 : index
    %c0_0 = arith.constant 0 : index
    %0 = vector.load %arg2[%c0, %c0_0] : memref<36x8xf32, #tpu.memory_space<vmem>>, vector<36x8xf32>
    %cst = arith.constant 0.000000e+00 : f32
    %1 = vector.broadcast %cst : f32 to vector<1x8xf32>
    %c0_i32 = arith.constant 0 : i32
    %c8_i32 = arith.constant 8 : i32
    %2 = arith.addi %c0_i32, %c8_i32 : i32
    %c1_i32 = arith.constant 1 : i32
    %3:2 = scf.for %arg5 = %c0_i32 to %2 step %c1_i32 iter_args(%arg6 = %1, %arg7 = %1) -> (vector<1x8xf32>, vector<1x8xf32>)  : i32 {
      %c0_i32_7 = arith.constant 0 : i32
      %10 = arith.addi %arg5, %c0_i32_7 : i32
      %c0_8 = arith.constant 0 : index
      %11 = arith.index_cast %10 : i32 to index
      %c0_9 = arith.constant 0 : index
      %c0_10 = arith.constant 0 : index
      %12 = vector.load %arg1[%c0_8, %11, %c0_9, %c0_10] : memref<1x10x10x4xf32, #tpu.memory_space<vmem>>, vector<1x1x10x4xf32>
      %13 = vector.shape_cast %12 : vector<1x1x10x4xf32> to vector<10x4xf32>
      %c1_i32_11 = arith.constant 1 : i32
      %14 = arith.addi %arg5, %c1_i32_11 : i32
      %c0_12 = arith.constant 0 : index
      %15 = arith.index_cast %14 : i32 to index
      %c0_13 = arith.constant 0 : index
      %c0_14 = arith.constant 0 : index
      %16 = vector.load %arg1[%c0_12, %15, %c0_13, %c0_14] : memref<1x10x10x4xf32, #tpu.memory_space<vmem>>, vector<1x1x10x4xf32>
      %17 = vector.shape_cast %16 : vector<1x1x10x4xf32> to vector<10x4xf32>
      %c2_i32 = arith.constant 2 : i32
      %18 = arith.addi %arg5, %c2_i32 : i32
      %c0_15 = arith.constant 0 : index
      %19 = arith.index_cast %18 : i32 to index
      %c0_16 = arith.constant 0 : index
      %c0_17 = arith.constant 0 : index
      %20 = vector.load %arg1[%c0_15, %19, %c0_16, %c0_17] : memref<1x10x10x4xf32, #tpu.memory_space<vmem>>, vector<1x1x10x4xf32>
      %21 = vector.shape_cast %20 : vector<1x1x10x4xf32> to vector<10x4xf32>
      %22 = vector.extract_strided_slice %13 {offsets = [0, 0], sizes = [8, 4], strides = [1, 1]} : vector<10x4xf32> to vector<8x4xf32>
      %23 = vector.extract_strided_slice %13 {offsets = [1, 0], sizes = [8, 4], strides = [1, 1]} : vector<10x4xf32> to vector<8x4xf32>
      %24 = vector.extract_strided_slice %13 {offsets = [2, 0], sizes = [8, 4], strides = [1, 1]} : vector<10x4xf32> to vector<8x4xf32>
      %25 = vector.extract_strided_slice %17 {offsets = [0, 0], sizes = [8, 4], strides = [1, 1]} : vector<10x4xf32> to vector<8x4xf32>
      %26 = vector.extract_strided_slice %17 {offsets = [1, 0], sizes = [8, 4], strides = [1, 1]} : vector<10x4xf32> to vector<8x4xf32>
      %27 = vector.extract_strided_slice %17 {offsets = [2, 0], sizes = [8, 4], strides = [1, 1]} : vector<10x4xf32> to vector<8x4xf32>
      %28 = vector.extract_strided_slice %21 {offsets = [0, 0], sizes = [8, 4], strides = [1, 1]} : vector<10x4xf32> to vector<8x4xf32>
      %29 = vector.extract_strided_slice %21 {offsets = [1, 0], sizes = [8, 4], strides = [1, 1]} : vector<10x4xf32> to vector<8x4xf32>
      %30 = vector.extract_strided_slice %21 {offsets = [2, 0], sizes = [8, 4], strides = [1, 1]} : vector<10x4xf32> to vector<8x4xf32>
      %31 = tpu.concatenate %22, %23, %24, %25, %26, %27, %28, %29, %30 in 1 : vector<8x4xf32>, vector<8x4xf32>, vector<8x4xf32>, vector<8x4xf32>, vector<8x4xf32>, vector<8x4xf32>, vector<8x4xf32>, vector<8x4xf32>, vector<8x4xf32> -> vector<8x36xf32>
      %cst_18 = arith.constant dense<0.000000e+00> : vector<8x8xf32>
      %32 = tpu.matmul %31, %0, %cst_18 {dimension_numbers = #tpu.dot_dimension_numbers<[1], [0], [0], [1], [0, 0, 1, 1], [], []>} : vector<8x36xf32>, vector<36x8xf32>, vector<8x8xf32> -> vector<8x8xf32>
      %c0_19 = arith.constant 0 : index
      %33 = arith.index_cast %arg5 : i32 to index
      %c0_20 = arith.constant 0 : index
      %c0_21 = arith.constant 0 : index
      %34 = vector.load %arg3[%c0_19, %33, %c0_20, %c0_21] : memref<1x8x8x8xf32, #tpu.memory_space<vmem>>, vector<1x1x8x8xf32>
      %35 = vector.shape_cast %34 : vector<1x1x8x8xf32> to vector<8x8xf32>
      %36 = vector.shape_cast %32 : vector<8x8xf32> to vector<1x1x8x8xf32>
      tpu.vector_store %arg3[%c0_19, %33, %c0_20, %c0_21], %36 {strides = array<i32>} : memref<1x8x8x8xf32, #tpu.memory_space<vmem>>, vector<1x1x8x8xf32>,
      %cst_22 = arith.constant dense<0.000000e+00> : vector<8xf32>
      %37 = vector.multi_reduction <add>, %32, %cst_22 [0] : vector<8x8xf32> to vector<8xf32>
      %38 = vector.shape_cast %37 : vector<8xf32> to vector<1x8xf32>
      %39 = arith.addf %arg6, %38 : vector<1x8xf32>
      %40 = arith.mulf %32, %32 : vector<8x8xf32>
      %cst_23 = arith.constant dense<0.000000e+00> : vector<8xf32>
      %41 = vector.multi_reduction <add>, %40, %cst_23 [0] : vector<8x8xf32> to vector<8xf32>
      %42 = vector.shape_cast %41 : vector<8xf32> to vector<1x8xf32>
      %43 = arith.addf %arg7, %42 : vector<1x8xf32>
      scf.yield %39, %43 : vector<1x8xf32>, vector<1x8xf32>
    }
    %c8_i32_1 = arith.constant 8 : i32
    %c0_2 = arith.constant 0 : index
    %c0_3 = arith.constant 0 : index
    %c0_4 = arith.constant 0 : index
    %4 = vector.load %arg4[%c0_2, %c0_3, %c0_4] : memref<1x2x8xf32, #tpu.memory_space<vmem>>, vector<1x1x8xf32>
    %5 = vector.shape_cast %4 : vector<1x1x8xf32> to vector<1x8xf32>
    %6 = vector.shape_cast %3#0 : vector<1x8xf32> to vector<1x1x8xf32>
    tpu.vector_store %arg4[%c0_2, %c0_3, %c0_4], %6 {strides = array<i32>} : memref<1x2x8xf32, #tpu.memory_space<vmem>>, vector<1x1x8xf32>,
    %c0_5 = arith.constant 0 : index
    %c1 = arith.constant 1 : index
    %c0_6 = arith.constant 0 : index
    %7 = vector.load %arg4[%c0_5, %c1, %c0_6] : memref<1x2x8xf32, #tpu.memory_space<vmem>>, vector<1x1x8xf32>
    %8 = vector.shape_cast %7 : vector<1x1x8xf32> to vector<1x8xf32>
    %9 = vector.shape_cast %3#1 : vector<1x8xf32> to vector<1x1x8xf32>
    tpu.vector_store %arg4[%c0_5, %c1, %c0_6], %9 {strides = array<i32>} : memref<1x2x8xf32, #tpu.memory_space<vmem>>, vector<1x1x8xf32>,
    return
  }
  func.func @transform_0(%arg0: i32) -> (i32, i32, i32, i32) {
    %c0_i32 = arith.constant 0 : i32
    %c0_i32_0 = arith.constant 0 : i32
    %c0_i32_1 = arith.constant 0 : i32
    %c0_i32_2 = arith.constant 0 : i32
    return %arg0, %c0_i32, %c0_i32_0, %c0_i32_1 : i32, i32, i32, i32
  }
  func.func @transform_1(%arg0: i32) -> (i32, i32) {
    %c0_i32 = arith.constant 0 : i32
    %c0_i32_0 = arith.constant 0 : i32
    %c0_i32_1 = arith.constant 0 : i32
    return %c0_i32, %c0_i32_0 : i32, i32
  }
  func.func @transform_2(%arg0: i32) -> (i32, i32, i32, i32) {
    %c0_i32 = arith.constant 0 : i32
    %c0_i32_0 = arith.constant 0 : i32
    %c0_i32_1 = arith.constant 0 : i32
    %c0_i32_2 = arith.constant 0 : i32
    return %arg0, %c0_i32, %c0_i32_0, %c0_i32_1 : i32, i32, i32, i32
  }
  func.func @transform_3(%arg0: i32) -> (i32, i32, i32) {
    %c0_i32 = arith.constant 0 : i32
    %c0_i32_0 = arith.constant 0 : i32
    %c0_i32_1 = arith.constant 0 : i32
    return %arg0, %c0_i32, %c0_i32_0 : i32, i32, i32
  }
}

module attributes {stable_mosaic.version = 11 : i64} {
  func.func @_bn_relu_kernel(%arg0: i32, %arg1: memref<16x64xf32, #tpu.memory_space<vmem>>, %arg2: memref<1x64xf32, #tpu.memory_space<vmem>>, %arg3: memref<1x64xf32, #tpu.memory_space<vmem>>, %arg4: memref<16x64xf32, #tpu.memory_space<vmem>>) attributes {dimension_semantics = [#tpu.dimension_semantics<parallel>], iteration_bounds = array<i64: 1>, scalar_prefetch = 0 : i64, scratch_operands = 0 : i64, tpu.core_type = #tpu.core_type<tc>, window_params = [{transform_indices = @transform_0, window_bounds = array<i64: 16, 64>}, {pipeline_mode = #tpu.pipeline_mode<synchronous>, transform_indices = @transform_1, window_bounds = array<i64: 1, 64>}, {pipeline_mode = #tpu.pipeline_mode<synchronous>, transform_indices = @transform_2, window_bounds = array<i64: 1, 64>}, {transform_indices = @transform_3, window_bounds = array<i64: 16, 64>}]} {
    %c0 = arith.constant 0 : index
    %c0_0 = arith.constant 0 : index
    %0 = vector.load %arg1[%c0, %c0_0] : memref<16x64xf32, #tpu.memory_space<vmem>>, vector<16x64xf32>
    %c0_1 = arith.constant 0 : index
    %c0_2 = arith.constant 0 : index
    %1 = vector.load %arg2[%c0_1, %c0_2] : memref<1x64xf32, #tpu.memory_space<vmem>>, vector<1x64xf32>
    %2 = vector.broadcast %1 : vector<1x64xf32> to vector<16x64xf32>
    %3 = arith.mulf %0, %2 : vector<16x64xf32>
    %c0_3 = arith.constant 0 : index
    %c0_4 = arith.constant 0 : index
    %4 = vector.load %arg3[%c0_3, %c0_4] : memref<1x64xf32, #tpu.memory_space<vmem>>, vector<1x64xf32>
    %5 = vector.broadcast %4 : vector<1x64xf32> to vector<16x64xf32>
    %6 = arith.addf %3, %5 : vector<16x64xf32>
    %cst = arith.constant 0.000000e+00 : f32
    %7 = vector.broadcast %cst : f32 to vector<16x64xf32>
    %8 = arith.maximumf %6, %7 : vector<16x64xf32>
    %c0_5 = arith.constant 0 : index
    %c0_6 = arith.constant 0 : index
    %9 = vector.load %arg4[%c0_5, %c0_6] : memref<16x64xf32, #tpu.memory_space<vmem>>, vector<16x64xf32>
    tpu.vector_store %arg4[%c0_5, %c0_6], %8 {strides = array<i32>} : memref<16x64xf32, #tpu.memory_space<vmem>>, vector<16x64xf32>,
    return
  }
  func.func @transform_0(%arg0: i32) -> (i32, i32) {
    %c0_i32 = arith.constant 0 : i32
    %c0_i32_0 = arith.constant 0 : i32
    return %arg0, %c0_i32 : i32, i32
  }
  func.func @transform_1(%arg0: i32) -> (i32, i32) {
    %c0_i32 = arith.constant 0 : i32
    %c0_i32_0 = arith.constant 0 : i32
    %c0_i32_1 = arith.constant 0 : i32
    return %c0_i32, %c0_i32_0 : i32, i32
  }
  func.func @transform_2(%arg0: i32) -> (i32, i32) {
    %c0_i32 = arith.constant 0 : i32
    %c0_i32_0 = arith.constant 0 : i32
    %c0_i32_1 = arith.constant 0 : i32
    return %c0_i32, %c0_i32_0 : i32, i32
  }
  func.func @transform_3(%arg0: i32) -> (i32, i32) {
    %c0_i32 = arith.constant 0 : i32
    %c0_i32_0 = arith.constant 0 : i32
    return %arg0, %c0_i32 : i32, i32
  }
}

module attributes {stable_mosaic.version = 11 : i64} {
  func.func @_conv_rows_kernel(%arg0: i32, %arg1: memref<1x10x10x8xf32, #tpu.memory_space<vmem>>, %arg2: memref<72x8xf32, #tpu.memory_space<vmem>>, %arg3: memref<1x8x8x8xf32, #tpu.memory_space<vmem>>, %arg4: memref<1x2x8xf32, #tpu.memory_space<vmem>>) attributes {dimension_semantics = [#tpu.dimension_semantics<parallel>], iteration_bounds = array<i64: 2>, scalar_prefetch = 0 : i64, scratch_operands = 0 : i64, tpu.core_type = #tpu.core_type<tc>, window_params = [{transform_indices = @transform_0, window_bounds = array<i64: 1, 10, 10, 8>}, {pipeline_mode = #tpu.pipeline_mode<synchronous>, transform_indices = @transform_1, window_bounds = array<i64: 72, 8>}, {transform_indices = @transform_2, window_bounds = array<i64: 1, 8, 8, 8>}, {transform_indices = @transform_3, window_bounds = array<i64: 1, 2, 8>}]} {
    %c0 = arith.constant 0 : index
    %c0_0 = arith.constant 0 : index
    %0 = vector.load %arg2[%c0, %c0_0] : memref<72x8xf32, #tpu.memory_space<vmem>>, vector<72x8xf32>
    %cst = arith.constant 0.000000e+00 : f32
    %1 = vector.broadcast %cst : f32 to vector<1x8xf32>
    %c0_i32 = arith.constant 0 : i32
    %c8_i32 = arith.constant 8 : i32
    %2 = arith.addi %c0_i32, %c8_i32 : i32
    %c1_i32 = arith.constant 1 : i32
    %3:2 = scf.for %arg5 = %c0_i32 to %2 step %c1_i32 iter_args(%arg6 = %1, %arg7 = %1) -> (vector<1x8xf32>, vector<1x8xf32>)  : i32 {
      %c0_i32_7 = arith.constant 0 : i32
      %10 = arith.addi %arg5, %c0_i32_7 : i32
      %c0_8 = arith.constant 0 : index
      %11 = arith.index_cast %10 : i32 to index
      %c0_9 = arith.constant 0 : index
      %c0_10 = arith.constant 0 : index
      %12 = vector.load %arg1[%c0_8, %11, %c0_9, %c0_10] : memref<1x10x10x8xf32, #tpu.memory_space<vmem>>, vector<1x1x10x8xf32>
      %13 = vector.shape_cast %12 : vector<1x1x10x8xf32> to vector<10x8xf32>
      %c1_i32_11 = arith.constant 1 : i32
      %14 = arith.addi %arg5, %c1_i32_11 : i32
      %c0_12 = arith.constant 0 : index
      %15 = arith.index_cast %14 : i32 to index
      %c0_13 = arith.constant 0 : index
      %c0_14 = arith.constant 0 : index
      %16 = vector.load %arg1[%c0_12, %15, %c0_13, %c0_14] : memref<1x10x10x8xf32, #tpu.memory_space<vmem>>, vector<1x1x10x8xf32>
      %17 = vector.shape_cast %16 : vector<1x1x10x8xf32> to vector<10x8xf32>
      %c2_i32 = arith.constant 2 : i32
      %18 = arith.addi %arg5, %c2_i32 : i32
      %c0_15 = arith.constant 0 : index
      %19 = arith.index_cast %18 : i32 to index
      %c0_16 = arith.constant 0 : index
      %c0_17 = arith.constant 0 : index
      %20 = vector.load %arg1[%c0_15, %19, %c0_16, %c0_17] : memref<1x10x10x8xf32, #tpu.memory_space<vmem>>, vector<1x1x10x8xf32>
      %21 = vector.shape_cast %20 : vector<1x1x10x8xf32> to vector<10x8xf32>
      %22 = vector.extract_strided_slice %13 {offsets = [0, 0], sizes = [8, 8], strides = [1, 1]} : vector<10x8xf32> to vector<8x8xf32>
      %23 = vector.extract_strided_slice %13 {offsets = [1, 0], sizes = [8, 8], strides = [1, 1]} : vector<10x8xf32> to vector<8x8xf32>
      %24 = vector.extract_strided_slice %13 {offsets = [2, 0], sizes = [8, 8], strides = [1, 1]} : vector<10x8xf32> to vector<8x8xf32>
      %25 = vector.extract_strided_slice %17 {offsets = [0, 0], sizes = [8, 8], strides = [1, 1]} : vector<10x8xf32> to vector<8x8xf32>
      %26 = vector.extract_strided_slice %17 {offsets = [1, 0], sizes = [8, 8], strides = [1, 1]} : vector<10x8xf32> to vector<8x8xf32>
      %27 = vector.extract_strided_slice %17 {offsets = [2, 0], sizes = [8, 8], strides = [1, 1]} : vector<10x8xf32> to vector<8x8xf32>
      %28 = vector.extract_strided_slice %21 {offsets = [0, 0], sizes = [8, 8], strides = [1, 1]} : vector<10x8xf32> to vector<8x8xf32>
      %29 = vector.extract_strided_slice %21 {offsets = [1, 0], sizes = [8, 8], strides = [1, 1]} : vector<10x8xf32> to vector<8x8xf32>
      %30 = vector.extract_strided_slice %21 {offsets = [2, 0], sizes = [8, 8], strides = [1, 1]} : vector<10x8xf32> to vector<8x8xf32>
      %31 = tpu.concatenate %22, %23, %24, %25, %26, %27, %28, %29, %30 in 1 : vector<8x8xf32>, vector<8x8xf32>, vector<8x8xf32>, vector<8x8xf32>, vector<8x8xf32>, vector<8x8xf32>, vector<8x8xf32>, vector<8x8xf32>, vector<8x8xf32> -> vector<8x72xf32>
      %cst_18 = arith.constant dense<0.000000e+00> : vector<8x8xf32>
      %32 = tpu.matmul %31, %0, %cst_18 {dimension_numbers = #tpu.dot_dimension_numbers<[1], [0], [0], [1], [0, 0, 1, 1], [], []>} : vector<8x72xf32>, vector<72x8xf32>, vector<8x8xf32> -> vector<8x8xf32>
      %c0_19 = arith.constant 0 : index
      %33 = arith.index_cast %arg5 : i32 to index
      %c0_20 = arith.constant 0 : index
      %c0_21 = arith.constant 0 : index
      %34 = vector.load %arg3[%c0_19, %33, %c0_20, %c0_21] : memref<1x8x8x8xf32, #tpu.memory_space<vmem>>, vector<1x1x8x8xf32>
      %35 = vector.shape_cast %34 : vector<1x1x8x8xf32> to vector<8x8xf32>
      %36 = vector.shape_cast %32 : vector<8x8xf32> to vector<1x1x8x8xf32>
      tpu.vector_store %arg3[%c0_19, %33, %c0_20, %c0_21], %36 {strides = array<i32>} : memref<1x8x8x8xf32, #tpu.memory_space<vmem>>, vector<1x1x8x8xf32>,
      %cst_22 = arith.constant dense<0.000000e+00> : vector<8xf32>
      %37 = vector.multi_reduction <add>, %32, %cst_22 [0] : vector<8x8xf32> to vector<8xf32>
      %38 = vector.shape_cast %37 : vector<8xf32> to vector<1x8xf32>
      %39 = arith.addf %arg6, %38 : vector<1x8xf32>
      %40 = arith.mulf %32, %32 : vector<8x8xf32>
      %cst_23 = arith.constant dense<0.000000e+00> : vector<8xf32>
      %41 = vector.multi_reduction <add>, %40, %cst_23 [0] : vector<8x8xf32> to vector<8xf32>
      %42 = vector.shape_cast %41 : vector<8xf32> to vector<1x8xf32>
      %43 = arith.addf %arg7, %42 : vector<1x8xf32>
      scf.yield %39, %43 : vector<1x8xf32>, vector<1x8xf32>
    }
    %c8_i32_1 = arith.constant 8 : i32
    %c0_2 = arith.constant 0 : index
    %c0_3 = arith.constant 0 : index
    %c0_4 = arith.constant 0 : index
    %4 = vector.load %arg4[%c0_2, %c0_3, %c0_4] : memref<1x2x8xf32, #tpu.memory_space<vmem>>, vector<1x1x8xf32>
    %5 = vector.shape_cast %4 : vector<1x1x8xf32> to vector<1x8xf32>
    %6 = vector.shape_cast %3#0 : vector<1x8xf32> to vector<1x1x8xf32>
    tpu.vector_store %arg4[%c0_2, %c0_3, %c0_4], %6 {strides = array<i32>} : memref<1x2x8xf32, #tpu.memory_space<vmem>>, vector<1x1x8xf32>,
    %c0_5 = arith.constant 0 : index
    %c1 = arith.constant 1 : index
    %c0_6 = arith.constant 0 : index
    %7 = vector.load %arg4[%c0_5, %c1, %c0_6] : memref<1x2x8xf32, #tpu.memory_space<vmem>>, vector<1x1x8xf32>
    %8 = vector.shape_cast %7 : vector<1x1x8xf32> to vector<1x8xf32>
    %9 = vector.shape_cast %3#1 : vector<1x8xf32> to vector<1x1x8xf32>
    tpu.vector_store %arg4[%c0_5, %c1, %c0_6], %9 {strides = array<i32>} : memref<1x2x8xf32, #tpu.memory_space<vmem>>, vector<1x1x8xf32>,
    return
  }
  func.func @transform_0(%arg0: i32) -> (i32, i32, i32, i32) {
    %c0_i32 = arith.constant 0 : i32
    %c0_i32_0 = arith.constant 0 : i32
    %c0_i32_1 = arith.constant 0 : i32
    %c0_i32_2 = arith.constant 0 : i32
    return %arg0, %c0_i32, %c0_i32_0, %c0_i32_1 : i32, i32, i32, i32
  }
  func.func @transform_1(%arg0: i32) -> (i32, i32) {
    %c0_i32 = arith.constant 0 : i32
    %c0_i32_0 = arith.constant 0 : i32
    %c0_i32_1 = arith.constant 0 : i32
    return %c0_i32, %c0_i32_0 : i32, i32
  }
  func.func @transform_2(%arg0: i32) -> (i32, i32, i32, i32) {
    %c0_i32 = arith.constant 0 : i32
    %c0_i32_0 = arith.constant 0 : i32
    %c0_i32_1 = arith.constant 0 : i32
    %c0_i32_2 = arith.constant 0 : i32
    return %arg0, %c0_i32, %c0_i32_0, %c0_i32_1 : i32, i32, i32, i32
  }
  func.func @transform_3(%arg0: i32) -> (i32, i32, i32) {
    %c0_i32 = arith.constant 0 : i32
    %c0_i32_0 = arith.constant 0 : i32
    %c0_i32_1 = arith.constant 0 : i32
    return %arg0, %c0_i32, %c0_i32_0 : i32, i32, i32
  }
}

</mosaic_0001>

<llo_original>
// kernel: tile.23
$region0: #{tile.23}
  #allocation0 [shape = 's32[1]{0}', space=sflag, size = 0x4, scoped, tag = 'scoped memory for tile.23']
  %s0 = inlined_call_operand.vmem [shape: f32[8], index: 0, kind: input, shape index: {}]
  %s1 = inlined_call_operand.vmem [shape: f32[8,8], index: 1, kind: output, shape index: {}]
  // Predicated region
  $region2: #{tile.23} parent=0 // pred_check
    _
  $region3: #{tile.23} parent=0 // pred_check_branch
    %3 = sbr.rel (0) target = $region5
  $region4: #{tile.23} parent=0 // pred_region
    _
  $region5: #{tile.23} parent=0 // pred_fallthru
    _
  %v4 = vld [vmem:[%s0] ss:$0 sm:$0xff]
  %5 = vst [vmem:[%s1] sm:$0xff] %v4

// kernel: tile.24
$region0: #{tile.24}
  %s0 = inlined_call_operand.vmem [shape: f32[8,8], index: 0, kind: input, shape index: {}]
  %s1 = inlined_call_operand.vmem [shape: f32[1,64], index: 1, kind: output, shape index: {}]
  $region1: #{tile.24} parent=0
    #allocation0 [shape = 'u8[4096]{0}', space=vmem, size = 0x1000, scoped, tag = 'scoped mem for output reshape']
    %v2 = vld [vmem:[%s0] sm:$0x1]
    %vm3 = vcmask 64512
    %4 = vst.msk [vmem:[#allocation0] sm:$0x1] %vm3, %v2
    %s5 = scalar_lea.vmem %s0, 7
    %v6 = vld [vmem:[%s5] sm:$0x1]
    %7 = vrot.lane.b32.xlu0 %v6, 56
    %v8 = vpop.permute.xlu0 %7
    %vm9 = vcmask 523712
    %10 = vst.msk [vmem:[#allocation0] sm:$0x1] %vm9, %v8
    %s11 = scalar_lea.vmem %s0, 6
    %v12 = vld [vmem:[%s11] sm:$0x1]
    %13 = vrot.lane.b32.xlu0 %v12, 48
    %v14 = vpop.permute.xlu0 %13
    %vm15 = vcmask 458112
    %16 = vst.msk [vmem:[#allocation0] sm:$0x1] %vm15, %v14
    %s17 = scalar_lea.vmem %s0, 5
    %v18 = vld [vmem:[%s17] sm:$0x1]
    %19 = vrot.lane.b32.xlu0 %v18, 40
    %v20 = vpop.permute.xlu0 %19
    %vm21 = vcmask 392512
    %22 = vst.msk [vmem:[#allocation0] sm:$0x1] %vm21, %v20
    %s23 = scalar_lea.vmem %s0, 4
    %v24 = vld [vmem:[%s23] sm:$0x1]
    %25 = vrot.lane.b32.xlu0 %v24, 32
    %v26 = vpop.permute.xlu0 %25
    %vm27 = vcmask 326912
    %28 = vst.msk [vmem:[#allocation0] sm:$0x1] %vm27, %v26
    %s29 = scalar_lea.vmem %s0, 3
    %v30 = vld [vmem:[%s29] sm:$0x1]
    %31 = vrot.lane.b32.xlu0 %v30, 24
    %v32 = vpop.permute.xlu0 %31
    %vm33 = vcmask 261312
    %34 = vst.msk [vmem:[#allocation0] sm:$0x1] %vm33, %v32
    %s35 = scalar_lea.vmem %s0, 2
    %v36 = vld [vmem:[%s35] sm:$0x1]
    %37 = vrot.lane.b32.xlu0 %v36, 16
    %v38 = vpop.permute.xlu0 %37
    %vm39 = vcmask 195712
    %40 = vst.msk [vmem:[#allocation0] sm:$0x1] %vm39, %v38
    %s41 = scalar_lea.vmem %s0, 1
    %v42 = vld [vmem:[%s41] sm:$0x1]
    %43 = vrot.lane.b32.xlu0 %v42, 8
    %v44 = vpop.permute.xlu0 %43
    %vm45 = vcmask 130112
    %46 = vst.msk [vmem:[#allocation0] sm:$0x1] %vm45, %v44
    %s48 = sshllo.u32 0, 1
    %v50 = vld [vmem:[#allocation0] sm:%s48]
    %s51 = sshllo.u32 0, 1
    %52 = vst [vmem:[%s1] sm:%s51] %v50

// kernel: down_forward.5
$region0: #{down_forward.5}
  #allocation0 [shape = 'u32[]', space=smem, size = 0x4, offset = 0x4, fixed_abs, tag = 'smem constant byte address 0x4 - core index']
  #allocation1 [shape = 'u32[144,128]{1,0:T(1,128)}', space=vmem, size = 0x12000, scoped, tag = 'internal scratch']
  %s0 = inlined_call_operand.vmem [shape: f32[16,2,8,8], index: 0, kind: input, shape index: {}]
  %s1 = inlined_call_operand.vmem [shape: f32[16,8,4], index: 1, kind: output, shape index: {}]
  %s2 = sld [smem:[#allocation0]]
  $region14: #{down_forward.5} parent=0
    _
  %s4 = ssub.s32 1, %s2
  %s5 = scalar_select 0, %s4, %s2
  // Predicated region
  $region2: #{down_forward.5} parent=0 // pred_check
    _
  $region3: #{down_forward.5} parent=0 // pred_check_branch
    %7 = sbr.rel (0) target = $region5
  $region4: #{down_forward.5} parent=0 // pred_region
    _
  $region5: #{down_forward.5} parent=0 // pred_fallthru
    _
  %v8 = vld [vmem:[%s0] sm:$0xff]
  %v9 = vld [vmem:[%s0 + $0x8] sm:$0xff]
  %v10 = vld [vmem:[%s0 + $0x10] sm:$0xff]
  %v11 = vld [vmem:[%s0 + $0x18] sm:$0xff]
  %v12 = vld [vmem:[%s0 + $0x20] sm:$0xff]
  %v13 = vld [vmem:[%s0 + $0x28] sm:$0xff]
  %v14 = vld [vmem:[%s0 + $0x30] sm:$0xff]
  %v15 = vld [vmem:[%s0 + $0x38] sm:$0xff]
  %v16 = vld [vmem:[%s0 + $0x40] sm:$0xff]
  %v17 = vld [vmem:[%s0 + $0x48] sm:$0xff]
  %v18 = vld [vmem:[%s0 + $0x50] sm:$0xff]
  %v19 = vld [vmem:[%s0 + $0x58] sm:$0xff]
  %v20 = vld [vmem:[%s0 + $0x60] sm:$0xff]
  %v21 = vld [vmem:[%s0 + $0x68] sm:$0xff]
  %v22 = vld [vmem:[%s0 + $0x70] sm:$0xff]
  %v23 = vld [vmem:[%s0 + $0x78] sm:$0xff]
  %v24 = vld [vmem:[%s0 + $0x80] sm:$0xff]
  %v25 = vld [vmem:[%s0 + $0x88] sm:$0xff]
  %v26 = vld [vmem:[%s0 + $0x90] sm:$0xff]
  %v27 = vld [vmem:[%s0 + $0x98] sm:$0xff]
  %v28 = vld [vmem:[%s0 + $0xa0] sm:$0xff]
  %v29 = vld [vmem:[%s0 + $0xa8] sm:$0xff]
  %v30 = vld [vmem:[%s0 + $0xb0] sm:$0xff]
  %v31 = vld [vmem:[%s0 + $0xb8] sm:$0xff]
  %v32 = vld [vmem:[%s0 + $0xc0] sm:$0xff]
  %v33 = vld [vmem:[%s0 + $0xc8] sm:$0xff]
  %v34 = vld [vmem:[%s0 + $0xd0] sm:$0xff]
  %v35 = vld [vmem:[%s0 + $0xd8] sm:$0xff]
  %v36 = vld [vmem:[%s0 + $0xe0] sm:$0xff]
  %v37 = vld [vmem:[%s0 + $0xe8] sm:$0xff]
  %v38 = vld [vmem:[%s0 + $0xf0] sm:$0xff]
  %v39 = vld [vmem:[%s0 + $0xf8] sm:$0xff]
  %v40 = vmax.f32 %v8, %v9
  %v41 = vmax.f32 %v10, %v11
  %v42 = vmax.f32 %v12, %v13
  %v43 = vmax.f32 %v14, %v15
  %v44 = vmax.f32 %v16, %v17
  %v45 = vmax.f32 %v18, %v19
  %v46 = vmax.f32 %v20, %v21
  %v47 = vmax.f32 %v22, %v23
  %v48 = vmax.f32 %v24, %v25
  %v49 = vmax.f32 %v26, %v27
  %v50 = vmax.f32 %v28, %v29
  %v51 = vmax.f32 %v30, %v31
  %v52 = vmax.f32 %v32, %v33
  %v53 = vmax.f32 %v34, %v35
  %v54 = vmax.f32 %v36, %v37
  %v55 = vmax.f32 %v38, %v39
  %72 = vrot.lane.b32.xlu0 %v40, 124
  %v73 = vpop.permute.xlu0 %72
  %74 = vrot.lane.b32.xlu0 %v41, 124
  %v75 = vpop.permute.xlu0 %74
  %76 = vrot.lane.b32.xlu0 %v42, 124
  %v77 = vpop.permute.xlu0 %76
  %78 = vrot.lane.b32.xlu0 %v43, 124
  %v79 = vpop.permute.xlu0 %78
  %80 = vrot.lane.b32.xlu0 %v44, 124
  %v81 = vpop.permute.xlu0 %80
  %82 = vrot.lane.b32.xlu0 %v45, 124
  %v83 = vpop.permute.xlu0 %82
  %84 = vrot.lane.b32.xlu0 %v46, 124
  %v85 = vpop.permute.xlu0 %84
  %86 = vrot.lane.b32.xlu0 %v47, 124
  %v87 = vpop.permute.xlu0 %86
  %88 = vrot.lane.b32.xlu0 %v48, 124
  %v89 = vpop.permute.xlu0 %88
  %90 = vrot.lane.b32.xlu0 %v49, 124
  %v91 = vpop.permute.xlu0 %90
  %92 = vrot.lane.b32.xlu0 %v50, 124
  %v93 = vpop.permute.xlu0 %92
  %94 = vrot.lane.b32.xlu0 %v51, 124
  %v95 = vpop.permute.xlu0 %94
  %96 = vrot.lane.b32.xlu0 %v52, 124
  %v97 = vpop.permute.xlu0 %96
  %98 = vrot.lane.b32.xlu0 %v53, 124
  %v99 = vpop.permute.xlu0 %98
  %100 = vrot.lane.b32.xlu0 %v54, 124
  %v101 = vpop.permute.xlu0 %100
  %102 = vrot.lane.b32.xlu0 %v55, 124
  %v103 = vpop.permute.xlu0 %102
  %v120 = vmax.f32 %v40, %v73
  %v121 = vmax.f32 %v41, %v75
  %v122 = vmax.f32 %v42, %v77
  %v123 = vmax.f32 %v43, %v79
  %v124 = vmax.f32 %v44, %v81
  %v125 = vmax.f32 %v45, %v83
  %v126 = vmax.f32 %v46, %v85
  %v127 = vmax.f32 %v47, %v87
  %v128 = vmax.f32 %v48, %v89
  %v129 = vmax.f32 %v49, %v91
  %v130 = vmax.f32 %v50, %v93
  %v131 = vmax.f32 %v51, %v95
  %v132 = vmax.f32 %v52, %v97
  %v133 = vmax.f32 %v53, %v99
  %v134 = vmax.f32 %v54, %v101
  %v135 = vmax.f32 %v55, %v103
  %vm136 = vcmask 31744
  %137 = vst.msk [vmem:[%s1] sm:$0xff] %vm136, %v120
  %138 = vst.msk [vmem:[%s1 + $0x8] sm:$0xff] %vm136, %v121
  %139 = vst.msk [vmem:[%s1 + $0x10] sm:$0xff] %vm136, %v122
  %140 = vst.msk [vmem:[%s1 + $0x18] sm:$0xff] %vm136, %v123
  %141 = vst.msk [vmem:[%s1 + $0x20] sm:$0xff] %vm136, %v124
  %142 = vst.msk [vmem:[%s1 + $0x28] sm:$0xff] %vm136, %v125
  %143 = vst.msk [vmem:[%s1 + $0x30] sm:$0xff] %vm136, %v126
  %144 = vst.msk [vmem:[%s1 + $0x38] sm:$0xff] %vm136, %v127
  %145 = vst.msk [vmem:[%s1 + $0x40] sm:$0xff] %vm136, %v128
  %146 = vst.msk [vmem:[%s1 + $0x48] sm:$0xff] %vm136, %v129
  %147 = vst.msk [vmem:[%s1 + $0x50] sm:$0xff] %vm136, %v130
  %148 = vst.msk [vmem:[%s1 + $0x58] sm:$0xff] %vm136, %v131
  %149 = vst.msk [vmem:[%s1 + $0x60] sm:$0xff] %vm136, %v132
  %150 = vst.msk [vmem:[%s1 + $0x68] sm:$0xff] %vm136, %v133
  %151 = vst.msk [vmem:[%s1 + $0x70] sm:$0xff] %vm136, %v134
  %152 = vst.msk [vmem:[%s1 + $0x78] sm:$0xff] %vm136, %v135
  // Predicated region
  $region6: #{down_forward.5} parent=0 // pred_check
    _
  $region7: #{down_forward.5} parent=0 // pred_check_branch
    %154 = sbr.rel (0) target = $region9
  $region8: #{down_forward.5} parent=0 // pred_region
    _
  $region9: #{down_forward.5} parent=0 // pred_fallthru
    _
  // Predicated region
  $region10: #{down_forward.5} parent=0 // pred_check
    _
  $region11: #{down_forward.5} parent=0 // pred_check_branch
    %156 = sbr.rel (0) target = $region13
  $region12: #{down_forward.5} parent=0 // pred_region
    _
  $region13: #{down_forward.5} parent=0 // pred_fallthru
    _

// kernel: down_forward.7
$region0: #{down_forward.7}
  #allocation0 [shape = 'u32[]', space=smem, size = 0x4, offset = 0x4, fixed_abs, tag = 'smem constant byte address 0x4 - core index']
  #allocation1 [shape = 'u32[144,128]{1,0:T(1,128)}', space=vmem, size = 0x12000, scoped, tag = 'internal scratch']
  %s0 = inlined_call_operand.vmem [shape: f32[16,64], index: 0, kind: input, shape index: {}]
  %s1 = inlined_call_operand.vmem [shape: f32[1,64], index: 1, kind: input, shape index: {}]
  %s2 = inlined_call_operand.vmem [shape: f32[1,64], index: 2, kind: input, shape index: {}]
  %s3 = inlined_call_operand.vmem [shape: f32[16,64], index: 3, kind: output, shape index: {}]
  %s4 = sld [smem:[#allocation0]]
  $region22: #{down_forward.7} parent=0
    _
  %s6 = ssub.s32 1, %s4
  %s7 = scalar_select 0, %s6, %s4
  // Predicated region
  $region2: #{down_forward.7} parent=0 // pred_check
    _
  $region3: #{down_forward.7} parent=0 // pred_check_branch
    %9 = sbr.rel (0) target = $region5
  $region4: #{down_forward.7} parent=0 // pred_region
    _
  $region5: #{down_forward.7} parent=0 // pred_fallthru
    _
  // Predicated region
  $region6: #{down_forward.7} parent=0 // pred_check
    _
  $region7: #{down_forward.7} parent=0 // pred_check_branch
    %11 = sbr.rel (0) target = $region9
  $region8: #{down_forward.7} parent=0 // pred_region
    _
  $region9: #{down_forward.7} parent=0 // pred_fallthru
    _
  // Predicated region
  $region10: #{down_forward.7} parent=0 // pred_check
    _
  $region11: #{down_forward.7} parent=0 // pred_check_branch
    %13 = sbr.rel (0) target = $region13
  $region12: #{down_forward.7} parent=0 // pred_region
    _
  $region13: #{down_forward.7} parent=0 // pred_fallthru
    _
  %v14 = vld [vmem:[%s0] sm:$0xff]
  %v15 = vld [vmem:[%s0 + $0x8] sm:$0xff]
  %v16 = vld [vmem:[%s1] sm:$0x1]
  %v18 = vlaneseq
  %v19 = vshrl.u32 %v18, 7
  %v20 = vsub.s32 0, %v19
  %v21 = vrot.slane %v16, %v20
  %v23 = vmul.f32 %v14, %v21
  %v24 = vmul.f32 %v15, %v21
  %v25 = vld [vmem:[%s2] sm:$0x1]
  %v27 = vlaneseq
  %v28 = vshrl.u32 %v27, 7
  %v29 = vsub.s32 0, %v28
  %v30 = vrot.slane %v25, %v29
  %v32 = vadd.f32 %v23, %v30
  %v33 = vadd.f32 %v24, %v30
  %v34 = vmax.f32 %v32, 0.0
  %v35 = vmax.f32 %v33, 0.0
  %vm36 = vcmask 523264
  %37 = vst.msk [vmem:[%s3] sm:$0xff] %vm36, %v34
  %38 = vst.msk [vmem:[%s3 + $0x8] sm:$0xff] %vm36, %v35
  // Predicated region
  $region14: #{down_forward.7} parent=0 // pred_check
    _
  $region15: #{down_forward.7} parent=0 // pred_check_branch
    %40 = sbr.rel (0) target = $region17
  $region16: #{down_forward.7} parent=0 // pred_region
    _
  $region17: #{down_forward.7} parent=0 // pred_fallthru
    _
  // Predicated region
  $region18: #{down_forward.7} parent=0 // pred_check
    _
  $region19: #{down_forward.7} parent=0 // pred_check_branch
    %42 = sbr.rel (0) target = $region21
  $region20: #{down_forward.7} parent=0 // pred_region
    _
  $region21: #{down_forward.7} parent=0 // pred_fallthru
    _

// kernel: down_forward.6
$region0: #{down_forward.6}
  #allocation0 [shape = 'u32[]', space=smem, size = 0x4, offset = 0x4, fixed_abs, tag = 'smem constant byte address 0x4 - core index']
  #allocation1 [shape = 'u32[144,128]{1,0:T(1,128)}', space=vmem, size = 0x12000, scoped, tag = 'internal scratch']
  %s0 = inlined_call_operand.vmem [shape: f32[2,10,10,4], index: 0, kind: input, shape index: {}]
  %s1 = inlined_call_operand.vmem [shape: f32[36,8], index: 1, kind: input, shape index: {}]
  %s2 = inlined_call_operand.vmem [shape: f32[2,8,8,8], index: 2, kind: output, shape index: {0}]
  %s3 = inlined_call_operand.vmem [shape: f32[2,2,8], index: 3, kind: output, shape index: {1}]
  %4 = xla_tuple %s2, %s3
  %s5 = sld [smem:[#allocation0]]
  $region56: #{down_forward.6} parent=0
    _
  %s7 = ssub.s32 1, %s5
  %s8 = scalar_select 0, %s7, %s5
  loop: start=0, step=1, limit=4
  $region2: #{down_forward.6} parent=0 // loop_pre_header
    _
  $region3: #{down_forward.6} parent=0 // loop_header
    %s10 = sphi 0, %s14
    %p11 = scmp.ge.s32.totalorder %s10, 4
    %s20 = sphi 0, %s22
    %s23 = sphi 0, %s20
    %s24 = sphi 0, %s23
    %s40 = sphi 0, %s24
    %s44 = sphi 0, %s44
    %s46 = sphi 0, %s44
    %s47 = sphi 0, %s46
    %s61 = sphi 0, %s47
    %s67 = sphi 0, %s69
    %s70 = sphi 0, %s67
    %s71 = sphi 0, %s70
    %s87 = sphi 0, %s71
    %s93 = sphi 0, %s95
    %s96 = sphi 0, %s93
    %s97 = sphi 0, %s96
    %s113 = sphi 0, %s97
  $region4: #{down_forward.6} parent=0 // loop_header_branch
    %13 = sbr.rel (%p11) target = $region8
  $region5: #{down_forward.6} parent=0 // loop_body
    %s15 = ssub.s32 %s10, 1
    %s16 = ssub.s32 %s10, 2
    %s17 = sadd.s32 %s10, 1
    %s18 = ssub.s32 %s10, %s17
    %p19 = scmp.eq.s32.totalorder %s18, 0
    %s21 = sadd.s32 %s20, 1
    %s22 = scalar_select %p19, %s20, %s21
    %p25 = pneg %p19
    %p26 = scmp.eq.s32.totalorder %s10, 1
    %p27 = por %p25, %p26
    %p28 = scmp.ne.s32.totalorder %s20, %s23
    %p29 = scmp.eq.s32.totalorder %s10, 0
    %p30 = por %p28, %p29
    %p31 = scmp.ne.s32.totalorder %s20, %s23
    %p32 = scmp.eq.s32.totalorder %s15, 1
    %p33 = por %p31, %p32
    %p34 = scmp.ne.s32.totalorder %s23, %s24
    %p35 = scmp.eq.s32.totalorder %s15, 0
    %p36 = por %p34, %p35
    %p37 = scmp.ne.s32.totalorder %s23, %s24
    %p38 = scmp.eq.s32.totalorder %s16, 1
    %p39 = por %p37, %p38
    %p41 = scmp.ne.s32.totalorder %s24, %s40
    %p42 = scmp.eq.s32.totalorder %s16, 0
    %p43 = por %p41, %p42
    %s45 = sadd.s32 %s44, 1
    %p48 = scmp.eq.s32.totalorder %s10, 1
    %p49 = scmp.ne.s32.totalorder %s44, %s46
    %p50 = scmp.eq.s32.totalorder %s10, 0
    %p51 = por %p49, %p50
    %p52 = scmp.ne.s32.totalorder %s44, %s46
    %p53 = scmp.eq.s32.totalorder %s15, 1
    %p54 = por %p52, %p53
    %p55 = scmp.ne.s32.totalorder %s46, %s47
    %p56 = scmp.eq.s32.totalorder %s15, 0
    %p57 = por %p55, %p56
    %p58 = scmp.ne.s32.totalorder %s46, %s47
    %p59 = scmp.eq.s32.totalorder %s16, 1
    %p60 = por %p58, %p59
    %p62 = scmp.ne.s32.totalorder %s47, %s61
    %p63 = scmp.eq.s32.totalorder %s16, 0
    %p64 = por %p62, %p63
    %s65 = ssub.s32 %s10, %s17
    %p66 = scmp.eq.s32.totalorder %s65, 0
    %s68 = sadd.s32 %s67, 1
    %s69 = scalar_select %p66, %s67, %s68
    %p72 = pneg %p66
    %p73 = scmp.eq.s32.totalorder %s10, 1
    %p74 = por %p72, %p73
    %p75 = scmp.ne.s32.totalorder %s67, %s70
    %p76 = scmp.eq.s32.totalorder %s10, 0
    %p77 = por %p75, %p76
    %p78 = scmp.ne.s32.totalorder %s67, %s70
    %p79 = scmp.eq.s32.totalorder %s15, 1
    %p80 = por %p78, %p79
    %p81 = scmp.ne.s32.totalorder %s70, %s71
    %p82 = scmp.eq.s32.totalorder %s15, 0
    %p83 = por %p81, %p82
    %p84 = scmp.ne.s32.totalorder %s70, %s71
    %p85 = scmp.eq.s32.totalorder %s16, 1
    %p86 = por %p84, %p85
    %p88 = scmp.ne.s32.totalorder %s71, %s87
    %p89 = scmp.eq.s32.totalorder %s16, 0
    %p90 = por %p88, %p89
    %s91 = ssub.s32 %s10, %s17
    %p92 = scmp.eq.s32.totalorder %s91, 0
    %s94 = sadd.s32 %s93, 1
    %s95 = scalar_select %p92, %s93, %s94
    %p98 = pneg %p92
    %p99 = scmp.eq.s32.totalorder %s10, 1
    %p100 = por %p98, %p99
    %p101 = scmp.ne.s32.totalorder %s93, %s96
    %p102 = scmp.eq.s32.totalorder %s10, 0
    %p103 = por %p101, %p102
    %p104 = scmp.ne.s32.totalorder %s93, %s96
    %p105 = scmp.eq.s32.totalorder %s15, 1
    %p106 = por %p104, %p105
    %p107 = scmp.ne.s32.totalorder %s96, %s97
    %p108 = scmp.eq.s32.totalorder %s15, 0
    %p109 = por %p107, %p108
    %p110 = scmp.ne.s32.totalorder %s96, %s97
    %p111 = scmp.eq.s32.totalorder %s16, 1
    %p112 = por %p110, %p111
    %p114 = scmp.ne.s32.totalorder %s97, %s113
    %p115 = scmp.eq.s32.totalorder %s16, 0
    %p116 = por %p114, %p115
    %p117 = scmp.le.s32.totalorder 1, %s10
    %p118 = scmp.lt.s32.totalorder %s10, 3
    %p119 = pnand %p117, %p118
    %p120 = pneg %p119
    // Predicated region
    $region9: #{down_forward.6} parent=5 // pred_check
      _
    $region10: #{down_forward.6} parent=5 // pred_check_branch
      %122 = sbr.rel (%p119) target = $region12
    $region11: #{down_forward.6} parent=5 // pred_region
      %s123 = ssub.s32 %s10, 1
      // Predicated region
      $region13: #{down_forward.6} parent=11 // pred_check
        %p124 = pneg %p57
      $region14: #{down_forward.6} parent=11 // pred_check_branch
        %126 = sbr.rel (%p124) target = $region16
      $region15: #{down_forward.6} parent=11 // pred_region
        _
      $region16: #{down_forward.6} parent=11 // pred_fallthru
        _
    $region12: #{down_forward.6} parent=5 // pred_fallthru
      _
    %p127 = scmp.lt.s32.totalorder %s10, 2
    // Predicated region
    $region17: #{down_forward.6} parent=5 // pred_check
      %p128 = pneg %p127
    $region18: #{down_forward.6} parent=5 // pred_check_branch
      %130 = sbr.rel (%p128) target = $region20
    $region19: #{down_forward.6} parent=5 // pred_region
      // Predicated region
      $region21: #{down_forward.6} parent=19 // pred_check
        %p131 = pneg %p30
      $region22: #{down_forward.6} parent=19 // pred_check_branch
        %133 = sbr.rel (%p131) target = $region24
      $region23: #{down_forward.6} parent=19 // pred_region
        %p134 = scmp.lt.s32.totalorder %s10, 1
        %s135 = scalar_select %p134, %s10, 1
        %s136 = smul.addr %s135, 20
        %s137 = smul.addr %s136, 8
        %s138 = scalar_lea.vmem %s0, %s137
      $region24: #{down_forward.6} parent=19 // pred_fallthru
        _
    $region20: #{down_forward.6} parent=5 // pred_fallthru
      _
    %p139 = scmp.le.s32.totalorder 1, %s10
    %p140 = scmp.lt.s32.totalorder %s10, 3
    %p141 = pnand %p139, %p140
    %p142 = pneg %p141
    // Predicated region
    $region25: #{down_forward.6} parent=5 // pred_check
      _
    $region26: #{down_forward.6} parent=5 // pred_check_branch
      %144 = sbr.rel (%p141) target = $region28
    $region27: #{down_forward.6} parent=5 // pred_region
      %s145 = ssub.s32 %s10, 1
      %p146 = scmp.lt.s32.totalorder %s15, 1
      %s147 = scalar_select %p146, %s15, 1
      %s148 = smul.addr %s147, 20
      %s149 = smul.addr %s148, 8
      %s150 = scalar_lea.vmem %s0, %s149
      %p151 = pneg %p36
      %p152 = pneg %p33
      %p153 = pneg %p57
      %p154 = pneg %p54
      %p155 = pneg %p83
      %p156 = pneg %p80
      %p157 = scmp.lt.s32.totalorder %s15, 1
      %s158 = scalar_select %p157, %s15, 1
      %s159 = smul.addr %s158, 8
      %s160 = smul.addr %s159, 8
      %s161 = scalar_lea.vmem %s2, %s160
      %p162 = pneg %p109
      %p163 = pneg %p106
      %p164 = scmp.lt.s32.totalorder %s15, 1
      %s165 = scalar_select %p164, %s15, 1
      %s166 = smul.addr %s165, 2
      %s167 = scalar_lea.vmem %s3, %s166
      %p168 = scmp.lt.s32.totalorder %s15, 1
      %s169 = scalar_select %p168, %s15, 1
      %s170 = smul.addr %s169, 20
      %s171 = smul.addr %s170, 8
      %s172 = scalar_lea.vmem %s0, %s171
      %p173 = scmp.lt.s32.totalorder %s15, 1
      %s174 = scalar_select %p173, %s15, 1
      %s175 = smul.addr %s174, 8
      %s176 = smul.addr %s175, 8
      %s177 = scalar_lea.vmem %s2, %s176
      %p178 = scmp.lt.s32.totalorder %s15, 1
      %s179 = scalar_select %p178, %s15, 1
      %s180 = smul.addr %s179, 2
      %s181 = scalar_lea.vmem %s3, %s180
      %v182 = vld [vmem:[%s1] sm:$0xff]
      %v183 = vld [vmem:[%s1 + $0x8] sm:$0xff]
      %v184 = vld [vmem:[%s1 + $0x10] sm:$0xff]
      %v185 = vld [vmem:[%s1 + $0x18] sm:$0xff]
      %v186 = vld [vmem:[%s1 + $0x20] sm:$0xf]
      loop: start=0, step=1, limit=8
      $region29: #{down_forward.6} parent=27 // loop_pre_header
        _
      $region30: #{down_forward.6} parent=27 // loop_header
        %s188 = sphi 0, %s192
        %p189 = scmp.ge.s32.totalorder %s188, 8
        %v193 = vphi 0.0, %v363
        %v194 = vphi 0.0, %v372
      $region31: #{down_forward.6} parent=27 // loop_header_branch
        %191 = sbr.rel (%p189) target = $region35
      $region32: #{down_forward.6} parent=27 // loop_body
        %s195 = smul.u32 %s188, 16
        %s196 = scalar_lea.vmem %s172, %s195
        %v197 = vld [vmem:[%s196] sm:$0xff]
        %v198 = vld [vmem:[%s196 + $0x8] sm:$0x3]
        %s199 = sadd.s32 %s188, 1
        %s200 = smul.u32 %s199, 16
        %s201 = scalar_lea.vmem %s172, %s200
        %v202 = vld [vmem:[%s201] sm:$0xff]
        %v203 = vld [vmem:[%s201 + $0x8] sm:$0x3]
        %s204 = sadd.s32 %s188, 2
        %s205 = smul.u32 %s204, 16
        %s206 = scalar_lea.vmem %s172, %s205
        %v207 = vld [vmem:[%s206] sm:$0xff]
        %v208 = vld [vmem:[%s206 + $0x8] sm:$0x3]
        %vm211 = vcmask 1046528
        %v212 = vrot.slane %v197, 1
        %v213 = vrot.slane %v198, 1
        %v214 = vsel %vm211, %v212, %v213
        %215 = vrot.lane.b32.xlu0 %v214, 4
        %v216 = vpop.permute.xlu0 %215
        %vm218 = vcmask 1045504
        %v219 = vrot.slane %v197, 2
        %v220 = vrot.slane %v198, 2
        %v221 = vsel %vm218, %v219, %v220
        %222 = vrot.lane.b32.xlu0 %v221, 8
        %v223 = vpop.permute.xlu0 %222
        %226 = vrot.lane.b32.xlu0 %v202, 12
        %v227 = vpop.permute.xlu0 %226
        %v230 = vrot.slane %v202, 1
        %v231 = vrot.slane %v203, 1
        %v232 = vsel %vm211, %v230, %v231
        %233 = vrot.lane.b32.xlu0 %v232, 16
        %v234 = vpop.permute.xlu0 %233
        %v236 = vrot.slane %v202, 2
        %v237 = vrot.slane %v203, 2
        %v238 = vsel %vm218, %v236, %v237
        %239 = vrot.lane.b32.xlu0 %v238, 20
        %v240 = vpop.permute.xlu0 %239
        %243 = vrot.lane.b32.xlu0 %v207, 24
        %v244 = vpop.permute.xlu0 %243
        %v247 = vrot.slane %v207, 1
        %v248 = vrot.slane %v208, 1
        %v249 = vsel %vm211, %v247, %v248
        %250 = vrot.lane.b32.xlu0 %v249, 28
        %v251 = vpop.permute.xlu0 %250
        %v253 = vrot.slane %v207, 2
        %v254 = vrot.slane %v208, 2
        %v255 = vsel %vm218, %v253, %v254
        %256 = vrot.lane.b32.xlu0 %v255, 32
        %v257 = vpop.permute.xlu0 %256
        %vm259 = vcmask 31744
        %v260 = vsel %vm259, %v197, %v216
        %vm261 = vcmask 64512
        %v262 = vsel %vm261, %v260, %v223
        %vm263 = vcmask 97280
        %v264 = vsel %vm263, %v262, %v227
        %vm265 = vcmask 130048
        %v266 = vsel %vm265, %v264, %v234
        %vm267 = vcmask 162816
        %v268 = vsel %vm267, %v266, %v240
        %vm269 = vcmask 195584
        %v270 = vsel %vm269, %v268, %v244
        %vm271 = vcmask 228352
        %v272 = vsel %vm271, %v270, %v251
        %vm273 = vcmask 261120
        %v274 = vsel %vm273, %v272, %v257
        %vm275 = vcmask 293888
        %v277 = vsel %vm275, %v274, 0
        %vm279 = vcmask 1043456
        %v281 = vsel %vm279, %v186, 0
        %283 = vmatprep.subr.mxu0 0.0
        %284 = vmatpush1.msra.mxu0 %v182
        %285 = vmatprep.subr.mxu0 0.0
        %286 = vmatpush1.msra.mxu0 %v183
        %287 = vmatprep.subr.mxu0 0.0
        %288 = vmatpush1.msra.mxu0 %v184
        %289 = vmatprep.subr.mxu0 0.0
        %290 = vmatpush1.msra.mxu0 %v185
        %291 = vmatprep.subr.mxu0 0.0
        %292 = vmatpush1.msra.mxu0 %v281
        %293 = vmatprep.subr.mxu0 0.0
        %294 = vmatpush1.msra.mxu0 0.0
        %295 = vmatprep.subr.mxu0 0.0
        %296 = vmatpush1.msra.mxu0 0.0
        %297 = vmatprep.subr.mxu0 0.0
        %298 = vmatpush1.msra.mxu0 0.0
        %299 = vmatprep.subr.mxu0 0.0
        %300 = vmatpush1.msra.mxu0 0.0
        %301 = vmatprep.subr.mxu0 0.0
        %302 = vmatpush1.msra.mxu0 0.0
        %303 = vmatprep.subr.mxu0 0.0
        %304 = vmatpush1.msra.mxu0 0.0
        %305 = vmatprep.subr.mxu0 0.0
        %306 = vmatpush1.msra.mxu0 0.0
        %307 = vmatprep.subr.mxu0 0.0
        %308 = vmatpush1.msra.mxu0 0.0
        %309 = vmatprep.subr.mxu0 0.0
        %310 = vmatpush1.msra.mxu0 0.0
        %311 = vmatprep.subr.mxu0 0.0
        %312 = vmatpush1.msra.mxu0 0.0
        %313 = vmatprep.subr.mxu0 0.0
        %314 = vmatpush1.msra.mxu0 0.0
        %315 = vmatprep.subr.mxu0 0.0
        %316 = vmatpush1.msra.mxu0 0.0
        %317 = vmatprep.subr.mxu0 0.0
        %318 = vmatpush1.msra.mxu0 0.0
        %319 = vmatprep.subr.mxu0 0.0
        %320 = vmatpush1.msra.mxu0 0.0
        %321 = vmatprep.subr.mxu0 0.0
        %322 = vmatpush1.msra.mxu0 0.0
        %323 = vmatprep.subr.mxu0 0.0
        %324 = vmatpush1.msra.mxu0 0.0
        %325 = vmatprep.subr.mxu0 0.0
        %326 = vmatpush1.msra.mxu0 0.0
        %327 = vmatprep.subr.mxu0 0.0
        %328 = vmatpush1.msra.mxu0 0.0
        %329 = vmatprep.subr.mxu0 0.0
        %330 = vmatpush1.msra.mxu0 0.0
        %331 = vmatprep.subr.mxu0 0.0
        %332 = vmatpush1.msra.mxu0 0.0
        %333 = vmatprep.subr.mxu0 0.0
        %334 = vmatpush1.msra.mxu0 0.0
        %335 = vmatprep.subr.mxu0 0.0
        %336 = vmatpush1.msra.mxu0 0.0
        %337 = vmatprep.subr.mxu0 0.0
        %338 = vmatpush1.msra.mxu0 0.0
        %339 = vmatprep.subr.mxu0 0.0
        %340 = vmatpush1.msra.mxu0 0.0
        %341 = vmatprep.subr.mxu0 0.0
        %342 = vmatpush1.msra.mxu0 0.0
        %343 = vmatprep.subr.mxu0 0.0
        %344 = vmatpush1.msra.mxu0 0.0
        %345 = vmatprep.subr.mxu0 0.0
        %346 = vmatpush1.msra.mxu0 0.0
        %347 = vmatprep.mubr.f32.mxu0 0.0
        %348 = vmatmul.mubr.f32.gmra.mrb[0].mxu0 %v277
        %v349 = vpop.f32.mrb[0].mxu0
        %v350 = vadd.f32 0.0, %v349
        %v351 = vpop.f32.mrb[0].mxu0
        %352 = vdwg.mxu0
        %s353 = smul.u32 %s188, 8
        %s354 = scalar_lea.vmem %s177, %s353
        %355 = vst.msk [vmem:[%s354] sm:$0xff] %vm261, %v350
        %v356 = vsel %vm261, %v350, 0.0
        %v357 = vrot.slane %v356, 4
        %v358 = vadd.f32 %v356, %v357
        %v359 = vrot.slane %v358, 2
        %v360 = vadd.f32 %v358, %v359
        %v361 = vrot.slane %v360, 1
        %v362 = vadd.f32 %v360, %v361
        %v363 = vadd.f32 %v193, %v362
        %v364 = vmul.f32 %v350, %v350
        %v365 = vsel %vm261, %v364, 0.0
        %v366 = vrot.slane %v365, 4
        %v367 = vadd.f32 %v365, %v366
        %v368 = vrot.slane %v367, 2
        %v369 = vadd.f32 %v367, %v368
        %v370 = vrot.slane %v369, 1
        %v371 = vadd.f32 %v369, %v370
        %v372 = vadd.f32 %v194, %v371
      $region33: #{down_forward.6} parent=27 // loop_footer
        %s192 = sadd.s32 1, %s188
      $region34: #{down_forward.6} parent=27 // loop_footer_branch
        %187 = sbr.rel target = $region30
      $region35: #{down_forward.6} parent=27 // loop_exit
        _
      %vm373 = vcmask 57344
      %374 = vst.msk [vmem:[%s181] sm:$0x1] %vm373, %v193
      %375 = vst.msk [vmem:[%s181 + $0x1] sm:$0x1] %vm373, %v194
      %p376 = scmp.lt.s32.totalorder %s15, 1
      %s377 = scalar_select %p376, %s15, 1
      %s378 = smul.addr %s377, 8
      %s379 = smul.addr %s378, 8
      %s380 = scalar_lea.vmem %s2, %s379
      %p381 = scmp.lt.s32.totalorder %s15, 1
      %s382 = scalar_select %p381, %s15, 1
      %s383 = smul.addr %s382, 2
      %s384 = scalar_lea.vmem %s3, %s383
      // Predicated region
      $region36: #{down_forward.6} parent=27 // pred_check
        %p385 = pneg %p80
      $region37: #{down_forward.6} parent=27 // pred_check_branch
        %387 = sbr.rel (%p385) target = $region39
      $region38: #{down_forward.6} parent=27 // pred_region
        _
      $region39: #{down_forward.6} parent=27 // pred_fallthru
        _
      // Predicated region
      $region40: #{down_forward.6} parent=27 // pred_check
        %p388 = pneg %p106
      $region41: #{down_forward.6} parent=27 // pred_check_branch
        %390 = sbr.rel (%p388) target = $region43
      $region42: #{down_forward.6} parent=27 // pred_region
        _
      $region43: #{down_forward.6} parent=27 // pred_fallthru
        _
    $region28: #{down_forward.6} parent=5 // pred_fallthru
      _
    %p391 = scmp.le.s32.totalorder 2, %s10
    // Predicated region
    $region44: #{down_forward.6} parent=5 // pred_check
      %p392 = pneg %p391
    $region45: #{down_forward.6} parent=5 // pred_check_branch
      %394 = sbr.rel (%p392) target = $region47
    $region46: #{down_forward.6} parent=5 // pred_region
      %s395 = ssub.s32 %s10, 2
      // Predicated region
      $region48: #{down_forward.6} parent=46 // pred_check
        %p396 = pneg %p86
      $region49: #{down_forward.6} parent=46 // pred_check_branch
        %398 = sbr.rel (%p396) target = $region51
      $region50: #{down_forward.6} parent=46 // pred_region
        %p399 = scmp.lt.s32.totalorder %s16, 1
        %s400 = scalar_select %p399, %s16, 1
        %s401 = smul.addr %s400, 8
        %s402 = smul.addr %s401, 8
        %s403 = scalar_lea.vmem %s2, %s402
      $region51: #{down_forward.6} parent=46 // pred_fallthru
        _
      // Predicated region
      $region52: #{down_forward.6} parent=46 // pred_check
        %p404 = pneg %p112
      $region53: #{down_forward.6} parent=46 // pred_check_branch
        %406 = sbr.rel (%p404) target = $region55
      $region54: #{down_forward.6} parent=46 // pred_region
        %p407 = scmp.lt.s32.totalorder %s16, 1
        %s408 = scalar_select %p407, %s16, 1
        %s409 = smul.addr %s408, 2
        %s410 = scalar_lea.vmem %s3, %s409
      $region55: #{down_forward.6} parent=46 // pred_fallthru
        _
    $region47: #{down_forward.6} parent=5 // pred_fallthru
      _
  $region6: #{down_forward.6} parent=0 // loop_footer
    %s14 = sadd.s32 1, %s10
  $region7: #{down_forward.6} parent=0 // loop_footer_branch
    %9 = sbr.rel target = $region3
  $region8: #{down_forward.6} parent=0 // loop_exit
    _

// kernel: down_forward.8
$region0: #{down_forward.8}
  #allocation0 [shape = 'u32[]', space=smem, size = 0x4, offset = 0x4, fixed_abs, tag = 'smem constant byte address 0x4 - core index']
  #allocation1 [shape = 'u32[144,128]{1,0:T(1,128)}', space=vmem, size = 0x12000, scoped, tag = 'internal scratch']
  %s0 = inlined_call_operand.vmem [shape: f32[2,10,10,8], index: 0, kind: input, shape index: {}]
  %s1 = inlined_call_operand.vmem [shape: f32[72,8], index: 1, kind: input, shape index: {}]
  %s2 = inlined_call_operand.vmem [shape: f32[2,8,8,8], index: 2, kind: output, shape index: {0}]
  %s3 = inlined_call_operand.vmem [shape: f32[2,2,8], index: 3, kind: output, shape index: {1}]
  %4 = xla_tuple %s2, %s3
  %s5 = sld [smem:[#allocation0]]
  $region56: #{down_forward.8} parent=0
    _
  %s7 = ssub.s32 1, %s5
  %s8 = scalar_select 0, %s7, %s5
  loop: start=0, step=1, limit=4
  $region2: #{down_forward.8} parent=0 // loop_pre_header
    _
  $region3: #{down_forward.8} parent=0 // loop_header
    %s10 = sphi 0, %s14
    %p11 = scmp.ge.s32.totalorder %s10, 4
    %s20 = sphi 0, %s22
    %s23 = sphi 0, %s20
    %s24 = sphi 0, %s23
    %s40 = sphi 0, %s24
    %s44 = sphi 0, %s44
    %s46 = sphi 0, %s44
    %s47 = sphi 0, %s46
    %s61 = sphi 0, %s47
    %s67 = sphi 0, %s69
    %s70 = sphi 0, %s67
    %s71 = sphi 0, %s70
    %s87 = sphi 0, %s71
    %s93 = sphi 0, %s95
    %s96 = sphi 0, %s93
    %s97 = sphi 0, %s96
    %s113 = sphi 0, %s97
  $region4: #{down_forward.8} parent=0 // loop_header_branch
    %13 = sbr.rel (%p11) target = $region8
  $region5: #{down_forward.8} parent=0 // loop_body
    %s15 = ssub.s32 %s10, 1
    %s16 = ssub.s32 %s10, 2
    %s17 = sadd.s32 %s10, 1
    %s18 = ssub.s32 %s10, %s17
    %p19 = scmp.eq.s32.totalorder %s18, 0
    %s21 = sadd.s32 %s20, 1
    %s22 = scalar_select %p19, %s20, %s21
    %p25 = pneg %p19
    %p26 = scmp.eq.s32.totalorder %s10, 1
    %p27 = por %p25, %p26
    %p28 = scmp.ne.s32.totalorder %s20, %s23
    %p29 = scmp.eq.s32.totalorder %s10, 0
    %p30 = por %p28, %p29
    %p31 = scmp.ne.s32.totalorder %s20, %s23
    %p32 = scmp.eq.s32.totalorder %s15, 1
    %p33 = por %p31, %p32
    %p34 = scmp.ne.s32.totalorder %s23, %s24
    %p35 = scmp.eq.s32.totalorder %s15, 0
    %p36 = por %p34, %p35
    %p37 = scmp.ne.s32.totalorder %s23, %s24
    %p38 = scmp.eq.s32.totalorder %s16, 1
    %p39 = por %p37, %p38
    %p41 = scmp.ne.s32.totalorder %s24, %s40
    %p42 = scmp.eq.s32.totalorder %s16, 0
    %p43 = por %p41, %p42
    %s45 = sadd.s32 %s44, 1
    %p48 = scmp.eq.s32.totalorder %s10, 1
    %p49 = scmp.ne.s32.totalorder %s44, %s46
    %p50 = scmp.eq.s32.totalorder %s10, 0
    %p51 = por %p49, %p50
    %p52 = scmp.ne.s32.totalorder %s44, %s46
    %p53 = scmp.eq.s32.totalorder %s15, 1
    %p54 = por %p52, %p53
    %p55 = scmp.ne.s32.totalorder %s46, %s47
    %p56 = scmp.eq.s32.totalorder %s15, 0
    %p57 = por %p55, %p56
    %p58 = scmp.ne.s32.totalorder %s46, %s47
    %p59 = scmp.eq.s32.totalorder %s16, 1
    %p60 = por %p58, %p59
    %p62 = scmp.ne.s32.totalorder %s47, %s61
    %p63 = scmp.eq.s32.totalorder %s16, 0
    %p64 = por %p62, %p63
    %s65 = ssub.s32 %s10, %s17
    %p66 = scmp.eq.s32.totalorder %s65, 0
    %s68 = sadd.s32 %s67, 1
    %s69 = scalar_select %p66, %s67, %s68
    %p72 = pneg %p66
    %p73 = scmp.eq.s32.totalorder %s10, 1
    %p74 = por %p72, %p73
    %p75 = scmp.ne.s32.totalorder %s67, %s70
    %p76 = scmp.eq.s32.totalorder %s10, 0
    %p77 = por %p75, %p76
    %p78 = scmp.ne.s32.totalorder %s67, %s70
    %p79 = scmp.eq.s32.totalorder %s15, 1
    %p80 = por %p78, %p79
    %p81 = scmp.ne.s32.totalorder %s70, %s71
    %p82 = scmp.eq.s32.totalorder %s15, 0
    %p83 = por %p81, %p82
    %p84 = scmp.ne.s32.totalorder %s70, %s71
    %p85 = scmp.eq.s32.totalorder %s16, 1
    %p86 = por %p84, %p85
    %p88 = scmp.ne.s32.totalorder %s71, %s87
    %p89 = scmp.eq.s32.totalorder %s16, 0
    %p90 = por %p88, %p89
    %s91 = ssub.s32 %s10, %s17
    %p92 = scmp.eq.s32.totalorder %s91, 0
    %s94 = sadd.s32 %s93, 1
    %s95 = scalar_select %p92, %s93, %s94
    %p98 = pneg %p92
    %p99 = scmp.eq.s32.totalorder %s10, 1
    %p100 = por %p98, %p99
    %p101 = scmp.ne.s32.totalorder %s93, %s96
    %p102 = scmp.eq.s32.totalorder %s10, 0
    %p103 = por %p101, %p102
    %p104 = scmp.ne.s32.totalorder %s93, %s96
    %p105 = scmp.eq.s32.totalorder %s15, 1
    %p106 = por %p104, %p105
    %p107 = scmp.ne.s32.totalorder %s96, %s97
    %p108 = scmp.eq.s32.totalorder %s15, 0
    %p109 = por %p107, %p108
    %p110 = scmp.ne.s32.totalorder %s96, %s97
    %p111 = scmp.eq.s32.totalorder %s16, 1
    %p112 = por %p110, %p111
    %p114 = scmp.ne.s32.totalorder %s97, %s113
    %p115 = scmp.eq.s32.totalorder %s16, 0
    %p116 = por %p114, %p115
    %p117 = scmp.le.s32.totalorder 1, %s10
    %p118 = scmp.lt.s32.totalorder %s10, 3
    %p119 = pnand %p117, %p118
    %p120 = pneg %p119
    // Predicated region
    $region9: #{down_forward.8} parent=5 // pred_check
      _
    $region10: #{down_forward.8} parent=5 // pred_check_branch
      %122 = sbr.rel (%p119) target = $region12
    $region11: #{down_forward.8} parent=5 // pred_region
      %s123 = ssub.s32 %s10, 1
      // Predicated region
      $region13: #{down_forward.8} parent=11 // pred_check
        %p124 = pneg %p57
      $region14: #{down_forward.8} parent=11 // pred_check_branch
        %126 = sbr.rel (%p124) target = $region16
      $region15: #{down_forward.8} parent=11 // pred_region
        _
      $region16: #{down_forward.8} parent=11 // pred_fallthru
        _
    $region12: #{down_forward.8} parent=5 // pred_fallthru
      _
    %p127 = scmp.lt.s32.totalorder %s10, 2
    // Predicated region
    $region17: #{down_forward.8} parent=5 // pred_check
      %p128 = pneg %p127
    $region18: #{down_forward.8} parent=5 // pred_check_branch
      %130 = sbr.rel (%p128) target = $region20
    $region19: #{down_forward.8} parent=5 // pred_region
      // Predicated region
      $region21: #{down_forward.8} parent=19 // pred_check
        %p131 = pneg %p30
      $region22: #{down_forward.8} parent=19 // pred_check_branch
        %133 = sbr.rel (%p131) target = $region24
      $region23: #{down_forward.8} parent=19 // pred_region
        %p134 = scmp.lt.s32.totalorder %s10, 1
        %s135 = scalar_select %p134, %s10, 1
        %s136 = smul.addr %s135, 20
        %s137 = smul.addr %s136, 8
        %s138 = scalar_lea.vmem %s0, %s137
      $region24: #{down_forward.8} parent=19 // pred_fallthru
        _
    $region20: #{down_forward.8} parent=5 // pred_fallthru
      _
    %p139 = scmp.le.s32.totalorder 1, %s10
    %p140 = scmp.lt.s32.totalorder %s10, 3
    %p141 = pnand %p139, %p140
    %p142 = pneg %p141
    // Predicated region
    $region25: #{down_forward.8} parent=5 // pred_check
      _
    $region26: #{down_forward.8} parent=5 // pred_check_branch
      %144 = sbr.rel (%p141) target = $region28
    $region27: #{down_forward.8} parent=5 // pred_region
      %s145 = ssub.s32 %s10, 1
      %p146 = scmp.lt.s32.totalorder %s15, 1
      %s147 = scalar_select %p146, %s15, 1
      %s148 = smul.addr %s147, 20
      %s149 = smul.addr %s148, 8
      %s150 = scalar_lea.vmem %s0, %s149
      %p151 = pneg %p36
      %p152 = pneg %p33
      %p153 = pneg %p57
      %p154 = pneg %p54
      %p155 = pneg %p83
      %p156 = pneg %p80
      %p157 = scmp.lt.s32.totalorder %s15, 1
      %s158 = scalar_select %p157, %s15, 1
      %s159 = smul.addr %s158, 8
      %s160 = smul.addr %s159, 8
      %s161 = scalar_lea.vmem %s2, %s160
      %p162 = pneg %p109
      %p163 = pneg %p106
      %p164 = scmp.lt.s32.totalorder %s15, 1
      %s165 = scalar_select %p164, %s15, 1
      %s166 = smul.addr %s165, 2
      %s167 = scalar_lea.vmem %s3, %s166
      %p168 = scmp.lt.s32.totalorder %s15, 1
      %s169 = scalar_select %p168, %s15, 1
      %s170 = smul.addr %s169, 20
      %s171 = smul.addr %s170, 8
      %s172 = scalar_lea.vmem %s0, %s171
      %p173 = scmp.lt.s32.totalorder %s15, 1
      %s174 = scalar_select %p173, %s15, 1
      %s175 = smul.addr %s174, 8
      %s176 = smul.addr %s175, 8
      %s177 = scalar_lea.vmem %s2, %s176
      %p178 = scmp.lt.s32.totalorder %s15, 1
      %s179 = scalar_select %p178, %s15, 1
      %s180 = smul.addr %s179, 2
      %s181 = scalar_lea.vmem %s3, %s180
      %v182 = vld [vmem:[%s1] sm:$0xff]
      %v183 = vld [vmem:[%s1 + $0x8] sm:$0xff]
      %v184 = vld [vmem:[%s1 + $0x10] sm:$0xff]
      %v185 = vld [vmem:[%s1 + $0x18] sm:$0xff]
      %v186 = vld [vmem:[%s1 + $0x20] sm:$0xff]
      %v187 = vld [vmem:[%s1 + $0x28] sm:$0xff]
      %v188 = vld [vmem:[%s1 + $0x30] sm:$0xff]
      %v189 = vld [vmem:[%s1 + $0x38] sm:$0xff]
      %v190 = vld [vmem:[%s1 + $0x40] sm:$0xff]
      loop: start=0, step=1, limit=8
      $region29: #{down_forward.8} parent=27 // loop_pre_header
        _
      $region30: #{down_forward.8} parent=27 // loop_header
        %s192 = sphi 0, %s196
        %p193 = scmp.ge.s32.totalorder %s192, 8
        %v197 = vphi 0.0, %v363
        %v198 = vphi 0.0, %v372
      $region31: #{down_forward.8} parent=27 // loop_header_branch
        %195 = sbr.rel (%p193) target = $region35
      $region32: #{down_forward.8} parent=27 // loop_body
        %s199 = smul.u32 %s192, 16
        %s200 = scalar_lea.vmem %s172, %s199
        %v201 = vld [vmem:[%s200] sm:$0xff]
        %v202 = vld [vmem:[%s200 + $0x8] sm:$0x3]
        %s203 = sadd.s32 %s192, 1
        %s204 = smul.u32 %s203, 16
        %s205 = scalar_lea.vmem %s172, %s204
        %v206 = vld [vmem:[%s205] sm:$0xff]
        %v207 = vld [vmem:[%s205 + $0x8] sm:$0x3]
        %s208 = sadd.s32 %s192, 2
        %s209 = smul.u32 %s208, 16
        %s210 = scalar_lea.vmem %s172, %s209
        %v211 = vld [vmem:[%s210] sm:$0xff]
        %v212 = vld [vmem:[%s210 + $0x8] sm:$0x3]
        %vm215 = vcmask 1046528
        %v216 = vrot.slane %v201, 1
        %v217 = vrot.slane %v202, 1
        %v218 = vsel %vm215, %v216, %v217
        %219 = vrot.lane.b32.xlu0 %v218, 8
        %v220 = vpop.permute.xlu0 %219
        %vm222 = vcmask 1045504
        %v223 = vrot.slane %v201, 2
        %v224 = vrot.slane %v202, 2
        %v225 = vsel %vm222, %v223, %v224
        %226 = vrot.lane.b32.xlu0 %v225, 16
        %v227 = vpop.permute.xlu0 %226
        %230 = vrot.lane.b32.xlu0 %v206, 24
        %v231 = vpop.permute.xlu0 %230
        %v234 = vrot.slane %v206, 1
        %v235 = vrot.slane %v207, 1
        %v236 = vsel %vm215, %v234, %v235
        %237 = vrot.lane.b32.xlu0 %v236, 32
        %v238 = vpop.permute.xlu0 %237
        %v240 = vrot.slane %v206, 2
        %v241 = vrot.slane %v207, 2
        %v242 = vsel %vm222, %v240, %v241
        %243 = vrot.lane.b32.xlu0 %v242, 40
        %v244 = vpop.permute.xlu0 %243
        %247 = vrot.lane.b32.xlu0 %v211, 48
        %v248 = vpop.permute.xlu0 %247
        %v251 = vrot.slane %v211, 1
        %v252 = vrot.slane %v212, 1
        %v253 = vsel %vm215, %v251, %v252
        %254 = vrot.lane.b32.xlu0 %v253, 56
        %v255 = vpop.permute.xlu0 %254
        %v257 = vrot.slane %v211, 2
        %v258 = vrot.slane %v212, 2
        %v259 = vsel %vm222, %v257, %v258
        %260 = vrot.lane.b32.xlu0 %v259, 64
        %v261 = vpop.permute.xlu0 %260
        %vm263 = vcmask 64512
        %v264 = vsel %vm263, %v201, %v220
        %vm265 = vcmask 130048
        %v266 = vsel %vm265, %v264, %v227
        %vm267 = vcmask 195584
        %v268 = vsel %vm267, %v266, %v231
        %vm269 = vcmask 261120
        %v270 = vsel %vm269, %v268, %v238
        %vm271 = vcmask 326656
        %v272 = vsel %vm271, %v270, %v244
        %vm273 = vcmask 392192
        %v274 = vsel %vm273, %v272, %v248
        %vm275 = vcmask 457728
        %v276 = vsel %vm275, %v274, %v255
        %vm277 = vcmask 523264
        %v278 = vsel %vm277, %v276, %v261
        %vm279 = vcmask 588800
        %v281 = vsel %vm279, %v278, 0
        %283 = vmatprep.subr.mxu0 0.0
        %284 = vmatpush1.msra.mxu0 %v182
        %285 = vmatprep.subr.mxu0 0.0
        %286 = vmatpush1.msra.mxu0 %v183
        %287 = vmatprep.subr.mxu0 0.0
        %288 = vmatpush1.msra.mxu0 %v184
        %289 = vmatprep.subr.mxu0 0.0
        %290 = vmatpush1.msra.mxu0 %v185
        %291 = vmatprep.subr.mxu0 0.0
        %292 = vmatpush1.msra.mxu0 %v186
        %293 = vmatprep.subr.mxu0 0.0
        %294 = vmatpush1.msra.mxu0 %v187
        %295 = vmatprep.subr.mxu0 0.0
        %296 = vmatpush1.msra.mxu0 %v188
        %297 = vmatprep.subr.mxu0 0.0
        %298 = vmatpush1.msra.mxu0 %v189
        %299 = vmatprep.subr.mxu0 0.0
        %300 = vmatpush1.msra.mxu0 %v190
        %301 = vmatprep.subr.mxu0 0.0
        %302 = vmatpush1.msra.mxu0 0.0
        %303 = vmatprep.subr.mxu0 0.0
        %304 = vmatpush1.msra.mxu0 0.0
        %305 = vmatprep.subr.mxu0 0.0
        %306 = vmatpush1.msra.mxu0 0.0
        %307 = vmatprep.subr.mxu0 0.0
        %308 = vmatpush1.msra.mxu0 0.0
        %309 = vmatprep.subr.mxu0 0.0
        %310 = vmatpush1.msra.mxu0 0.0
        %311 = vmatprep.subr.mxu0 0.0
        %312 = vmatpush1.msra.mxu0 0.0
        %313 = vmatprep.subr.mxu0 0.0
        %314 = vmatpush1.msra.mxu0 0.0
        %315 = vmatprep.subr.mxu0 0.0
        %316 = vmatpush1.msra.mxu0 0.0
        %317 = vmatprep.subr.mxu0 0.0
        %318 = vmatpush1.msra.mxu0 0.0
        %319 = vmatprep.subr.mxu0 0.0
        %320 = vmatpush1.msra.mxu0 0.0
        %321 = vmatprep.subr.mxu0 0.0
        %322 = vmatpush1.msra.mxu0 0.0
        %323 = vmatprep.subr.mxu0 0.0
        %324 = vmatpush1.msra.mxu0 0.0
        %325 = vmatprep.subr.mxu0 0.0
        %326 = vmatpush1.msra.mxu0 0.0
        %327 = vmatprep.subr.mxu0 0.0
        %328 = vmatpush1.msra.mxu0 0.0
        %329 = vmatprep.subr.mxu0 0.0
        %330 = vmatpush1.msra.mxu0 0.0
        %331 = vmatprep.subr.mxu0 0.0
        %332 = vmatpush1.msra.mxu0 0.0
        %333 = vmatprep.subr.mxu0 0.0
        %334 = vmatpush1.msra.mxu0 0.0
        %335 = vmatprep.subr.mxu0 0.0
        %336 = vmatpush1.msra.mxu0 0.0
        %337 = vmatprep.subr.mxu0 0.0
        %338 = vmatpush1.msra.mxu0 0.0
        %339 = vmatprep.subr.mxu0 0.0
        %340 = vmatpush1.msra.mxu0 0.0
        %341 = vmatprep.subr.mxu0 0.0
        %342 = vmatpush1.msra.mxu0 0.0
        %343 = vmatprep.subr.mxu0 0.0
        %344 = vmatpush1.msra.mxu0 0.0
        %345 = vmatprep.subr.mxu0 0.0
        %346 = vmatpush1.msra.mxu0 0.0
        %347 = vmatprep.mubr.f32.mxu0 0.0
        %348 = vmatmul.mubr.f32.gmra.mrb[0].mxu0 %v281
        %v349 = vpop.f32.mrb[0].mxu0
        %v350 = vadd.f32 0.0, %v349
        %v351 = vpop.f32.mrb[0].mxu0
        %352 = vdwg.mxu0
        %s353 = smul.u32 %s192, 8
        %s354 = scalar_lea.vmem %s177, %s353
        %355 = vst.msk [vmem:[%s354] sm:$0xff] %vm263, %v350
        %v356 = vsel %vm263, %v350, 0.0
        %v357 = vrot.slane %v356, 4
        %v358 = vadd.f32 %v356, %v357
        %v359 = vrot.slane %v358, 2
        %v360 = vadd.f32 %v358, %v359
        %v361 = vrot.slane %v360, 1
        %v362 = vadd.f32 %v360, %v361
        %v363 = vadd.f32 %v197, %v362
        %v364 = vmul.f32 %v350, %v350
        %v365 = vsel %vm263, %v364, 0.0
        %v366 = vrot.slane %v365, 4
        %v367 = vadd.f32 %v365, %v366
        %v368 = vrot.slane %v367, 2
        %v369 = vadd.f32 %v367, %v368
        %v370 = vrot.slane %v369, 1
        %v371 = vadd.f32 %v369, %v370
        %v372 = vadd.f32 %v198, %v371
      $region33: #{down_forward.8} parent=27 // loop_footer
        %s196 = sadd.s32 1, %s192
      $region34: #{down_forward.8} parent=27 // loop_footer_branch
        %191 = sbr.rel target = $region30
      $region35: #{down_forward.8} parent=27 // loop_exit
        _
      %vm373 = vcmask 57344
      %374 = vst.msk [vmem:[%s181] sm:$0x1] %vm373, %v197
      %375 = vst.msk [vmem:[%s181 + $0x1] sm:$0x1] %vm373, %v198
      %p376 = scmp.lt.s32.totalorder %s15, 1
      %s377 = scalar_select %p376, %s15, 1
      %s378 = smul.addr %s377, 8
      %s379 = smul.addr %s378, 8
      %s380 = scalar_lea.vmem %s2, %s379
      %p381 = scmp.lt.s32.totalorder %s15, 1
      %s382 = scalar_select %p381, %s15, 1
      %s383 = smul.addr %s382, 2
      %s384 = scalar_lea.vmem %s3, %s383
      // Predicated region
      $region36: #{down_forward.8} parent=27 // pred_check
        %p385 = pneg %p80
      $region37: #{down_forward.8} parent=27 // pred_check_branch
        %387 = sbr.rel (%p385) target = $region39
      $region38: #{down_forward.8} parent=27 // pred_region
        _
      $region39: #{down_forward.8} parent=27 // pred_fallthru
        _
      // Predicated region
      $region40: #{down_forward.8} parent=27 // pred_check
        %p388 = pneg %p106
      $region41: #{down_forward.8} parent=27 // pred_check_branch
        %390 = sbr.rel (%p388) target = $region43
      $region42: #{down_forward.8} parent=27 // pred_region
        _
      $region43: #{down_forward.8} parent=27 // pred_fallthru
        _
    $region28: #{down_forward.8} parent=5 // pred_fallthru
      _
    %p391 = scmp.le.s32.totalorder 2, %s10
    // Predicated region
    $region44: #{down_forward.8} parent=5 // pred_check
      %p392 = pneg %p391
    $region45: #{down_forward.8} parent=5 // pred_check_branch
      %394 = sbr.rel (%p392) target = $region47
    $region46: #{down_forward.8} parent=5 // pred_region
      %s395 = ssub.s32 %s10, 2
      // Predicated region
      $region48: #{down_forward.8} parent=46 // pred_check
        %p396 = pneg %p86
      $region49: #{down_forward.8} parent=46 // pred_check_branch
        %398 = sbr.rel (%p396) target = $region51
      $region50: #{down_forward.8} parent=46 // pred_region
        %p399 = scmp.lt.s32.totalorder %s16, 1
        %s400 = scalar_select %p399, %s16, 1
        %s401 = smul.addr %s400, 8
        %s402 = smul.addr %s401, 8
        %s403 = scalar_lea.vmem %s2, %s402
      $region51: #{down_forward.8} parent=46 // pred_fallthru
        _
      // Predicated region
      $region52: #{down_forward.8} parent=46 // pred_check
        %p404 = pneg %p112
      $region53: #{down_forward.8} parent=46 // pred_check_branch
        %406 = sbr.rel (%p404) target = $region55
      $region54: #{down_forward.8} parent=46 // pred_region
        %p407 = scmp.lt.s32.totalorder %s16, 1
        %s408 = scalar_select %p407, %s16, 1
        %s409 = smul.addr %s408, 2
        %s410 = scalar_lea.vmem %s3, %s409
      $region55: #{down_forward.8} parent=46 // pred_fallthru
        _
    $region47: #{down_forward.8} parent=5 // pred_fallthru
      _
  $region6: #{down_forward.8} parent=0 // loop_footer
    %s14 = sadd.s32 1, %s10
  $region7: #{down_forward.8} parent=0 // loop_footer_branch
    %9 = sbr.rel target = $region3
  $region8: #{down_forward.8} parent=0 // loop_exit
    _

</llo_original>
